<compile_context>
chip_gen: v6e
topology: v6e:2x2x1
jax: 0.10.0
libtpu: 0.0.40
codegen_flags: <defaults>
</compile_context>

<pallas_src>
import functools

import jax
import jax.numpy as jnp
from jax import lax
from jax.experimental import pallas as pl
from jax.experimental.pallas import tpu as pltpu

LATENT_DIM = 32
OUTPUT_DIM = 16
LAYERS = [128, 256, 128]
BATCH = 256          # whole BN batch per kernel call (train-mode BN needs it)
OUT_PAD = 128        # lane-dense padded output width (multiple of 128)
SUB_ROWS = 128       # static batch sub-tile for VPU/MXU interleave
BN_EPS = 1e-5


# ---------------------------------------------------------------------------
# In-kernel helpers (operate on lists of static batch sub-tiles).
# ---------------------------------------------------------------------------
def _row(p_ref, r):
    # One packed per-feature vector (bias / gamma / beta) as a [1, F] f32 row.
    return p_ref[r:r + 1, :]


def _scale_shift(xs, gamma, beta, inv_b):
    # Training-mode BatchNorm1d folded to y = x*scale + shift (all f32):
    #   scale = gamma * rsqrt(var + eps), shift = beta - mean*scale
    # One-pass variance var = E[x^2] - E[x]^2, accumulated over sub-tiles.
    s = xs[0].sum(axis=0, keepdims=True)
    s2 = (xs[0] * xs[0]).sum(axis=0, keepdims=True)
    for xt in xs[1:]:
        s = s + xt.sum(axis=0, keepdims=True)
        s2 = s2 + (xt * xt).sum(axis=0, keepdims=True)
    mean = s * inv_b
    var = s2 * inv_b - mean * mean
    scale = gamma * lax.rsqrt(var + BN_EPS)      # EUP rsqrt
    shift = beta - mean * scale
    return scale, shift


def _apply_bn_relu_dot(xs, scale, shift, w_ref, bias):
    # Per sub-tile: (x*scale+shift, relu) on the VPU in f32, cast to bf16 and
    # feed the MXU (f32 accumulate).  Static unroll over tiles lets the MXU of
    # tile t overlap the VPU pass of tile t+1.
    w = w_ref[...]                               # bf16, loaded once per layer
    return [jnp.dot(jnp.maximum(xt * scale + shift, 0.0).astype(jnp.bfloat16),
                    w, preferred_element_type=jnp.float32) + bias
            for xt in xs]


def generator_kernel(z_ref,
                     w1_ref, p1_ref,
                     w2_ref, p2_ref,
                     w3_ref, p3_ref,
                     w4_ref, b4_ref,
                     out_ref, *, n_sub):
    b = z_ref.shape[0]
    tile = b // n_sub
    inv_b = 1.0 / b

    # Layer 1: Linear(latent -> 128), bf16 operands, f32 accumulate + f32 bias.
    w1 = w1_ref[...]
    b1 = _row(p1_ref, 0)
    xs = [jnp.dot(z_ref[t * tile:(t + 1) * tile, :].astype(jnp.bfloat16),
                  w1, preferred_element_type=jnp.float32) + b1
          for t in range(n_sub)]

    # BN+ReLU -> Linear(128 -> 256)
    sc, sh = _scale_shift(xs, _row(p1_ref, 1), _row(p1_ref, 2), inv_b)
    xs = _apply_bn_relu_dot(xs, sc, sh, w2_ref, _row(p2_ref, 0))

    # BN+ReLU -> Linear(256 -> 128)
    sc, sh = _scale_shift(xs, _row(p2_ref, 1), _row(p2_ref, 2), inv_b)
    xs = _apply_bn_relu_dot(xs, sc, sh, w3_ref, _row(p3_ref, 0))

    # BN+ReLU -> Linear(128 -> 128-padded) -> Tanh, stored lane-dense per tile.
    sc, sh = _scale_shift(xs, _row(p3_ref, 1), _row(p3_ref, 2), inv_b)
    w4 = w4_ref[...]
    b4 = b4_ref[...]
    for t in range(n_sub):
        h = jnp.maximum(xs[t] * sc + sh, 0.0).astype(jnp.bfloat16)
        y = jnp.dot(h, w4, preferred_element_type=jnp.float32) + b4
        out_ref[t * tile:(t + 1) * tile, :] = jnp.tanh(y)


# ---------------------------------------------------------------------------
# Wrapper
# ---------------------------------------------------------------------------
def _vmem_budget_bytes(batch):
    # Whole-batch-resident working set: ~5 f32 activation slabs of <=256 cols
    # (~5 KB/row) + ~0.2 MB of params + headroom.  Capped at 48 MiB so it also
    # fits v7x's 64 MiB physical VMEM; raise toward ~96 MiB only on v5e/v6e
    # (128 MiB VMEM) for very large resident batches.
    need = batch * 5 * 1024 + (4 << 20)
    return int(min(max(need, 16 << 20), 48 << 20))


@jax.jit
def tabular_generator(z, params):
    """z: [B, LATENT_DIM] float32.  params: flat tuple of f32 weight arrays."""
    B = z.shape[0]
    (w1, b1, g1, be1, w2, b2, g2, be2, w3, b3, g3, be3, w4, b4) = params

    # Zero-pad the final layer to OUT_PAD columns -> unmasked full-lane stores.
    pad = OUT_PAD - OUTPUT_DIM
    w4p = jnp.pad(w4, ((0, 0), (0, pad)))
    b4p = jnp.pad(b4, ((0, 0), (0, pad)))

    # bf16 weights once (MXU-native on v5e/v6e/v7x; halves weight DMA bytes).
    w1b, w2b, w3b, w4b = (w.astype(jnp.bfloat16) for w in (w1, w2, w3, w4p))

    # Pack per-layer bias/gamma/beta into one [3, F] f32 array each.
    p1 = jnp.concatenate([b1, g1, be1], axis=0)
    p2 = jnp.concatenate([b2, g2, be2], axis=0)
    p3 = jnp.concatenate([b3, g3, be3], axis=0)

    n_sub = B // SUB_ROWS if (B % SUB_ROWS == 0 and B >= 2 * SUB_ROWS) else 1

    args = (z, w1b, p1, w2b, p2, w3b, p3, w4b, b4p)
    vmem_spec = pl.BlockSpec(memory_space=pltpu.MemorySpace.VMEM)

    matmul_macs = (LATENT_DIM * LAYERS[0] + LAYERS[0] * LAYERS[1]
                   + LAYERS[1] * LAYERS[2] + LAYERS[2] * OUT_PAD)
    cost = pl.CostEstimate(
        flops=2 * B * matmul_macs,
        transcendentals=B * OUT_PAD + 3 * max(LAYERS),      # tanh + rsqrt
        bytes_accessed=(z.size * 4 + B * OUT_PAD * 4
                        + 2 * (w1b.size + w2b.size + w3b.size + w4b.size)
                        + 4 * (p1.size + p2.size + p3.size + b4p.size)),
    )

    out_pad = pl.pallas_call(
        functools.partial(generator_kernel, n_sub=n_sub),
        out_shape=jax.ShapeDtypeStruct((B, OUT_PAD), jnp.float32),
        # Grid-less call: nothing to pipeline, every operand single-buffered
        # and VMEM-resident for the whole kernel.
        in_specs=[vmem_spec] * len(args),
        out_specs=vmem_spec,
        compiler_params=pltpu.CompilerParams(
            vmem_limit_bytes=_vmem_budget_bytes(B)),
        cost_estimate=cost,
    )(*args)

    # TODO(synk): at very large B on v5e, benchmark a (B, 16) masked-store
    # output (or fuse this un-pad into the consumer) against the padded store.
    return out_pad[:, :OUTPUT_DIM]


# ---------------------------------------------------------------------------
# Parameter init + references
# ---------------------------------------------------------------------------
def init_params(key):
    dims = [LATENT_DIM] + LAYERS + [OUTPUT_DIM]
    params = []
    keys = jax.random.split(key, 2 * (len(dims) - 1))
    ki = 0
    for li in range(len(dims) - 1):
        fan_in, fan_out = dims[li], dims[li + 1]
        bound = 1.0 / jnp.sqrt(fan_in)
        # Stored as [in, out] (transposed vs. PyTorch's [out, in]).
        w = jax.random.uniform(keys[ki], (fan_in, fan_out), jnp.float32,
                               minval=-bound, maxval=bound)
        b = jax.random.uniform(keys[ki + 1], (1, fan_out), jnp.float32,
                               minval=-bound, maxval=bound)
        ki += 2
        params.extend([w, b])
        if li < len(dims) - 2:  # hidden layers get BatchNorm (gamma=1, beta=0)
            params.append(jnp.ones((1, fan_out), jnp.float32))
            params.append(jnp.zeros((1, fan_out), jnp.float32))
    return tuple(params)


def reference_forward(z, params):
    """Pure-f32 JAX reference matching the PyTorch module (train-mode BN)."""
    (w1, b1, g1, be1, w2, b2, g2, be2, w3, b3, g3, be3, w4, b4) = params

    def bn_relu(x, g, be):
        mean = jnp.mean(x, axis=0, keepdims=True)
        var = jnp.mean((x - mean) ** 2, axis=0, keepdims=True)
        return jnp.maximum((x - mean) / jnp.sqrt(var + BN_EPS) * g + be, 0.0)

    h = bn_relu(z @ w1 + b1, g1, be1)
    h = bn_relu(h @ w2 + b2, g2, be2)
    h = bn_relu(h @ w3 + b3, g3, be3)
    return jnp.tanh(h @ w4 + b4)


def reference_forward_bf16(z, params):
    """Reference using the same bf16-operand / f32-accumulate matmuls and the
    same folded one-pass BN as the kernel (tight numerical check)."""
    (w1, b1, g1, be1, w2, b2, g2, be2, w3, b3, g3, be3, w4, b4) = params

    def dot_bf16(x, w):
        return jnp.dot(x.astype(jnp.bfloat16), w.astype(jnp.bfloat16),
                       preferred_element_type=jnp.float32)

    def bn_relu(x, g, be):
        mean = jnp.mean(x, axis=0, keepdims=True)
        var = jnp.mean(x * x, axis=0, keepdims=True) - mean * mean
        scale = g * lax.rsqrt(var + BN_EPS)
        shift = be - mean * scale
        return jnp.maximum(x * scale + shift, 0.0)

    h = bn_relu(dot_bf16(z, w1) + b1, g1, be1)
    h = bn_relu(dot_bf16(h, w2) + b2, g2, be2)
    h = bn_relu(dot_bf16(h, w3) + b3, g3, be3)
    return jnp.tanh(dot_bf16(h, w4) + b4)


if __name__ == "__main__":
    key = jax.random.PRNGKey(0)
    k_params, k_z = jax.random.split(key)
    params = init_params(k_params)
    z = jax.random.normal(k_z, (BATCH, LATENT_DIM), jnp.float32)

    out = jax.block_until_ready(tabular_generator(z, params))
    assert out.shape == (BATCH, OUTPUT_DIM)

    # Tight check vs. a reference with identical bf16-matmul / folded-BN math.
    ref_bf16 = reference_forward_bf16(z, params)
    d_bf16 = float(jnp.max(jnp.abs(out - ref_bf16)))
    assert d_bf16 < 5e-3, f"bf16-matched reference mismatch: {d_bf16}"

    # Loose check vs. the pure-f32 module semantics (bf16 MXU operands only
    # perturb by O(1e-2) on tanh outputs in [-1, 1]).
    ref_f32 = reference_forward(z, params)
    d_f32 = float(jnp.max(jnp.abs(out - ref_f32)))
    assert d_f32 < 7.5e-2, f"f32 reference mismatch: {d_f32}"

    print("KERNEL_OK")
</pallas_src>

<mosaic_0001>
module attributes {stable_mosaic.version = 11 : i64} {
  func.func @generator_kernel(%arg0: memref<256x32xf32, #tpu.memory_space<vmem>>, %arg1: memref<32x128xbf16, #tpu.memory_space<vmem>>, %arg2: memref<3x128xf32, #tpu.memory_space<vmem>>, %arg3: memref<128x256xbf16, #tpu.memory_space<vmem>>, %arg4: memref<3x256xf32, #tpu.memory_space<vmem>>, %arg5: memref<256x128xbf16, #tpu.memory_space<vmem>>, %arg6: memref<3x128xf32, #tpu.memory_space<vmem>>, %arg7: memref<128x128xbf16, #tpu.memory_space<vmem>>, %arg8: memref<1x128xf32, #tpu.memory_space<vmem>>, %arg9: memref<256x128xf32, #tpu.memory_space<vmem>>) attributes {dimension_semantics = [], scalar_prefetch = 0 : i64, scratch_operands = 0 : i64, tpu.core_type = #tpu.core_type<tc>} {
    %c0 = arith.constant 0 : index
    %c0_0 = arith.constant 0 : index
    %0 = vector.load %arg1[%c0, %c0_0] : memref<32x128xbf16, #tpu.memory_space<vmem>>, vector<32x128xbf16>
    %c0_1 = arith.constant 0 : index
    %c0_2 = arith.constant 0 : index
    %1 = vector.load %arg2[%c0_1, %c0_2] : memref<3x128xf32, #tpu.memory_space<vmem>>, vector<1x128xf32>
    %c0_3 = arith.constant 0 : index
    %c0_4 = arith.constant 0 : index
    %2 = vector.load %arg0[%c0_3, %c0_4] : memref<256x32xf32, #tpu.memory_space<vmem>>, vector<128x32xf32>
    %3 = arith.truncf %2 : vector<128x32xf32> to vector<128x32xbf16>
    %cst = arith.constant dense<0.000000e+00> : vector<128x128xf32>
    %4 = tpu.matmul %3, %0, %cst {dimension_numbers = #tpu.dot_dimension_numbers<[1], [0], [0], [1], [0, 0, 1, 1], [], []>} : vector<128x32xbf16>, vector<32x128xbf16>, vector<128x128xf32> -> vector<128x128xf32>
    %5 = vector.broadcast %1 : vector<1x128xf32> to vector<128x128xf32>
    %6 = arith.addf %4, %5 : vector<128x128xf32>
    %c128 = arith.constant 128 : index
    %c0_5 = arith.constant 0 : index
    %7 = vector.load %arg0[%c128, %c0_5] : memref<256x32xf32, #tpu.memory_space<vmem>>, vector<128x32xf32>
    %8 = arith.truncf %7 : vector<128x32xf32> to vector<128x32xbf16>
    %cst_6 = arith.constant dense<0.000000e+00> : vector<128x128xf32>
    %9 = tpu.matmul %8, %0, %cst_6 {dimension_numbers = #tpu.dot_dimension_numbers<[1], [0], [0], [1], [0, 0, 1, 1], [], []>} : vector<128x32xbf16>, vector<32x128xbf16>, vector<128x128xf32> -> vector<128x128xf32>
    %10 = vector.broadcast %1 : vector<1x128xf32> to vector<128x128xf32>
    %11 = arith.addf %9, %10 : vector<128x128xf32>
    %c1 = arith.constant 1 : index
    %c0_7 = arith.constant 0 : index
    %12 = vector.load %arg2[%c1, %c0_7] : memref<3x128xf32, #tpu.memory_space<vmem>>, vector<1x128xf32>
    %c2 = arith.constant 2 : index
    %c0_8 = arith.constant 0 : index
    %13 = vector.load %arg2[%c2, %c0_8] : memref<3x128xf32, #tpu.memory_space<vmem>>, vector<1x128xf32>
    %cst_9 = arith.constant dense<0.000000e+00> : vector<128xf32>
    %14 = vector.multi_reduction <add>, %6, %cst_9 [0] : vector<128x128xf32> to vector<128xf32>
    %15 = vector.shape_cast %14 : vector<128xf32> to vector<1x128xf32>
    %16 = arith.mulf %6, %6 : vector<128x128xf32>
    %cst_10 = arith.constant dense<0.000000e+00> : vector<128xf32>
    %17 = vector.multi_reduction <add>, %16, %cst_10 [0] : vector<128x128xf32> to vector<128xf32>
    %18 = vector.shape_cast %17 : vector<128xf32> to vector<1x128xf32>
    %cst_11 = arith.constant dense<0.000000e+00> : vector<128xf32>
    %19 = vector.multi_reduction <add>, %11, %cst_11 [0] : vector<128x128xf32> to vector<128xf32>
    %20 = vector.shape_cast %19 : vector<128xf32> to vector<1x128xf32>
    %21 = arith.addf %15, %20 : vector<1x128xf32>
    %22 = arith.mulf %11, %11 : vector<128x128xf32>
    %cst_12 = arith.constant dense<0.000000e+00> : vector<128xf32>
    %23 = vector.multi_reduction <add>, %22, %cst_12 [0] : vector<128x128xf32> to vector<128xf32>
    %24 = vector.shape_cast %23 : vector<128xf32> to vector<1x128xf32>
    %25 = arith.addf %18, %24 : vector<1x128xf32>
    %cst_13 = arith.constant 3.906250e-03 : f32
    %26 = vector.broadcast %cst_13 : f32 to vector<1x128xf32>
    %27 = arith.mulf %21, %26 : vector<1x128xf32>
    %cst_14 = arith.constant 3.906250e-03 : f32
    %28 = vector.broadcast %cst_14 : f32 to vector<1x128xf32>
    %29 = arith.mulf %25, %28 : vector<1x128xf32>
    %30 = arith.mulf %27, %27 : vector<1x128xf32>
    %31 = arith.subf %29, %30 : vector<1x128xf32>
    %cst_15 = arith.constant 9.99999974E-6 : f32
    %32 = vector.broadcast %cst_15 : f32 to vector<1x128xf32>
    %33 = arith.addf %31, %32 : vector<1x128xf32>
    %34 = math.rsqrt %33 : vector<1x128xf32>
    %35 = arith.mulf %12, %34 : vector<1x128xf32>
    %36 = arith.mulf %27, %35 : vector<1x128xf32>
    %37 = arith.subf %13, %36 : vector<1x128xf32>
    %c0_16 = arith.constant 0 : index
    %c0_17 = arith.constant 0 : index
    %38 = vector.load %arg4[%c0_16, %c0_17] : memref<3x256xf32, #tpu.memory_space<vmem>>, vector<1x256xf32>
    %c0_18 = arith.constant 0 : index
    %c0_19 = arith.constant 0 : index
    %39 = vector.load %arg3[%c0_18, %c0_19] : memref<128x256xbf16, #tpu.memory_space<vmem>>, vector<128x256xbf16>
    %40 = vector.broadcast %35 : vector<1x128xf32> to vector<128x128xf32>
    %41 = arith.mulf %6, %40 : vector<128x128xf32>
    %42 = vector.broadcast %37 : vector<1x128xf32> to vector<128x128xf32>
    %43 = arith.addf %41, %42 : vector<128x128xf32>
    %cst_20 = arith.constant 0.000000e+00 : f32
    %44 = vector.broadcast %cst_20 : f32 to vector<128x128xf32>
    %45 = arith.maximumf %43, %44 : vector<128x128xf32>
    %46 = arith.truncf %45 : vector<128x128xf32> to vector<128x128xbf16>
    %cst_21 = arith.constant dense<0.000000e+00> : vector<128x256xf32>
    %47 = tpu.matmul %46, %39, %cst_21 {dimension_numbers = #tpu.dot_dimension_numbers<[1], [0], [0], [1], [0, 0, 1, 1], [], []>} : vector<128x128xbf16>, vector<128x256xbf16>, vector<128x256xf32> -> vector<128x256xf32>
    %48 = vector.broadcast %38 : vector<1x256xf32> to vector<128x256xf32>
    %49 = arith.addf %47, %48 : vector<128x256xf32>
    %50 = vector.broadcast %35 : vector<1x128xf32> to vector<128x128xf32>
    %51 = arith.mulf %11, %50 : vector<128x128xf32>
    %52 = vector.broadcast %37 : vector<1x128xf32> to vector<128x128xf32>
    %53 = arith.addf %51, %52 : vector<128x128xf32>
    %cst_22 = arith.constant 0.000000e+00 : f32
    %54 = vector.broadcast %cst_22 : f32 to vector<128x128xf32>
    %55 = arith.maximumf %53, %54 : vector<128x128xf32>
    %56 = arith.truncf %55 : vector<128x128xf32> to vector<128x128xbf16>
    %cst_23 = arith.constant dense<0.000000e+00> : vector<128x256xf32>
    %57 = tpu.matmul %56, %39, %cst_23 {dimension_numbers = #tpu.dot_dimension_numbers<[1], [0], [0], [1], [0, 0, 1, 1], [], []>} : vector<128x128xbf16>, vector<128x256xbf16>, vector<128x256xf32> -> vector<128x256xf32>
    %58 = vector.broadcast %38 : vector<1x256xf32> to vector<128x256xf32>
    %59 = arith.addf %57, %58 : vector<128x256xf32>
    %c1_24 = arith.constant 1 : index
    %c0_25 = arith.constant 0 : index
    %60 = vector.load %arg4[%c1_24, %c0_25] : memref<3x256xf32, #tpu.memory_space<vmem>>, vector<1x256xf32>
    %c2_26 = arith.constant 2 : index
    %c0_27 = arith.constant 0 : index
    %61 = vector.load %arg4[%c2_26, %c0_27] : memref<3x256xf32, #tpu.memory_space<vmem>>, vector<1x256xf32>
    %cst_28 = arith.constant dense<0.000000e+00> : vector<256xf32>
    %62 = vector.multi_reduction <add>, %49, %cst_28 [0] : vector<128x256xf32> to vector<256xf32>
    %63 = vector.shape_cast %62 : vector<256xf32> to vector<1x256xf32>
    %64 = arith.mulf %49, %49 : vector<128x256xf32>
    %cst_29 = arith.constant dense<0.000000e+00> : vector<256xf32>
    %65 = vector.multi_reduction <add>, %64, %cst_29 [0] : vector<128x256xf32> to vector<256xf32>
    %66 = vector.shape_cast %65 : vector<256xf32> to vector<1x256xf32>
    %cst_30 = arith.constant dense<0.000000e+00> : vector<256xf32>
    %67 = vector.multi_reduction <add>, %59, %cst_30 [0] : vector<128x256xf32> to vector<256xf32>
    %68 = vector.shape_cast %67 : vector<256xf32> to vector<1x256xf32>
    %69 = arith.addf %63, %68 : vector<1x256xf32>
    %70 = arith.mulf %59, %59 : vector<128x256xf32>
    %cst_31 = arith.constant dense<0.000000e+00> : vector<256xf32>
    %71 = vector.multi_reduction <add>, %70, %cst_31 [0] : vector<128x256xf32> to vector<256xf32>
    %72 = vector.shape_cast %71 : vector<256xf32> to vector<1x256xf32>
    %73 = arith.addf %66, %72 : vector<1x256xf32>
    %cst_32 = arith.constant 3.906250e-03 : f32
    %74 = vector.broadcast %cst_32 : f32 to vector<1x256xf32>
    %75 = arith.mulf %69, %74 : vector<1x256xf32>
    %cst_33 = arith.constant 3.906250e-03 : f32
    %76 = vector.broadcast %cst_33 : f32 to vector<1x256xf32>
    %77 = arith.mulf %73, %76 : vector<1x256xf32>
    %78 = arith.mulf %75, %75 : vector<1x256xf32>
    %79 = arith.subf %77, %78 : vector<1x256xf32>
    %cst_34 = arith.constant 9.99999974E-6 : f32
    %80 = vector.broadcast %cst_34 : f32 to vector<1x256xf32>
    %81 = arith.addf %79, %80 : vector<1x256xf32>
    %82 = math.rsqrt %81 : vector<1x256xf32>
    %83 = arith.mulf %60, %82 : vector<1x256xf32>
    %84 = arith.mulf %75, %83 : vector<1x256xf32>
    %85 = arith.subf %61, %84 : vector<1x256xf32>
    %c0_35 = arith.constant 0 : index
    %c0_36 = arith.constant 0 : index
    %86 = vector.load %arg6[%c0_35, %c0_36] : memref<3x128xf32, #tpu.memory_space<vmem>>, vector<1x128xf32>
    %c0_37 = arith.constant 0 : index
    %c0_38 = arith.constant 0 : index
    %87 = vector.load %arg5[%c0_37, %c0_38] : memref<256x128xbf16, #tpu.memory_space<vmem>>, vector<256x128xbf16>
    %88 = vector.broadcast %83 : vector<1x256xf32> to vector<128x256xf32>
    %89 = arith.mulf %49, %88 : vector<128x256xf32>
    %90 = vector.broadcast %85 : vector<1x256xf32> to vector<128x256xf32>
    %91 = arith.addf %89, %90 : vector<128x256xf32>
    %cst_39 = arith.constant 0.000000e+00 : f32
    %92 = vector.broadcast %cst_39 : f32 to vector<128x256xf32>
    %93 = arith.maximumf %91, %92 : vector<128x256xf32>
    %94 = arith.truncf %93 : vector<128x256xf32> to vector<128x256xbf16>
    %cst_40 = arith.constant dense<0.000000e+00> : vector<128x128xf32>
    %95 = tpu.matmul %94, %87, %cst_40 {dimension_numbers = #tpu.dot_dimension_numbers<[1], [0], [0], [1], [0, 0, 1, 1], [], []>} : vector<128x256xbf16>, vector<256x128xbf16>, vector<128x128xf32> -> vector<128x128xf32>
    %96 = vector.broadcast %86 : vector<1x128xf32> to vector<128x128xf32>
    %97 = arith.addf %95, %96 : vector<128x128xf32>
    %98 = vector.broadcast %83 : vector<1x256xf32> to vector<128x256xf32>
    %99 = arith.mulf %59, %98 : vector<128x256xf32>
    %100 = vector.broadcast %85 : vector<1x256xf32> to vector<128x256xf32>
    %101 = arith.addf %99, %100 : vector<128x256xf32>
    %cst_41 = arith.constant 0.000000e+00 : f32
    %102 = vector.broadcast %cst_41 : f32 to vector<128x256xf32>
    %103 = arith.maximumf %101, %102 : vector<128x256xf32>
    %104 = arith.truncf %103 : vector<128x256xf32> to vector<128x256xbf16>
    %cst_42 = arith.constant dense<0.000000e+00> : vector<128x128xf32>
    %105 = tpu.matmul %104, %87, %cst_42 {dimension_numbers = #tpu.dot_dimension_numbers<[1], [0], [0], [1], [0, 0, 1, 1], [], []>} : vector<128x256xbf16>, vector<256x128xbf16>, vector<128x128xf32> -> vector<128x128xf32>
    %106 = vector.broadcast %86 : vector<1x128xf32> to vector<128x128xf32>
    %107 = arith.addf %105, %106 : vector<128x128xf32>
    %c1_43 = arith.constant 1 : index
    %c0_44 = arith.constant 0 : index
    %108 = vector.load %arg6[%c1_43, %c0_44] : memref<3x128xf32, #tpu.memory_space<vmem>>, vector<1x128xf32>
    %c2_45 = arith.constant 2 : index
    %c0_46 = arith.constant 0 : index
    %109 = vector.load %arg6[%c2_45, %c0_46] : memref<3x128xf32, #tpu.memory_space<vmem>>, vector<1x128xf32>
    %cst_47 = arith.constant dense<0.000000e+00> : vector<128xf32>
    %110 = vector.multi_reduction <add>, %97, %cst_47 [0] : vector<128x128xf32> to vector<128xf32>
    %111 = vector.shape_cast %110 : vector<128xf32> to vector<1x128xf32>
    %112 = arith.mulf %97, %97 : vector<128x128xf32>
    %cst_48 = arith.constant dense<0.000000e+00> : vector<128xf32>
    %113 = vector.multi_reduction <add>, %112, %cst_48 [0] : vector<128x128xf32> to vector<128xf32>
    %114 = vector.shape_cast %113 : vector<128xf32> to vector<1x128xf32>
    %cst_49 = arith.constant dense<0.000000e+00> : vector<128xf32>
    %115 = vector.multi_reduction <add>, %107, %cst_49 [0] : vector<128x128xf32> to vector<128xf32>
    %116 = vector.shape_cast %115 : vector<128xf32> to vector<1x128xf32>
    %117 = arith.addf %111, %116 : vector<1x128xf32>
    %118 = arith.mulf %107, %107 : vector<128x128xf32>
    %cst_50 = arith.constant dense<0.000000e+00> : vector<128xf32>
    %119 = vector.multi_reduction <add>, %118, %cst_50 [0] : vector<128x128xf32> to vector<128xf32>
    %120 = vector.shape_cast %119 : vector<128xf32> to vector<1x128xf32>
    %121 = arith.addf %114, %120 : vector<1x128xf32>
    %cst_51 = arith.constant 3.906250e-03 : f32
    %122 = vector.broadcast %cst_51 : f32 to vector<1x128xf32>
    %123 = arith.mulf %117, %122 : vector<1x128xf32>
    %cst_52 = arith.constant 3.906250e-03 : f32
    %124 = vector.broadcast %cst_52 : f32 to vector<1x128xf32>
    %125 = arith.mulf %121, %124 : vector<1x128xf32>
    %126 = arith.mulf %123, %123 : vector<1x128xf32>
    %127 = arith.subf %125, %126 : vector<1x128xf32>
    %cst_53 = arith.constant 9.99999974E-6 : f32
    %128 = vector.broadcast %cst_53 : f32 to vector<1x128xf32>
    %129 = arith.addf %127, %128 : vector<1x128xf32>
    %130 = math.rsqrt %129 : vector<1x128xf32>
    %131 = arith.mulf %108, %130 : vector<1x128xf32>
    %132 = arith.mulf %123, %131 : vector<1x128xf32>
    %133 = arith.subf %109, %132 : vector<1x128xf32>
    %c0_54 = arith.constant 0 : index
    %c0_55 = arith.constant 0 : index
    %134 = vector.load %arg7[%c0_54, %c0_55] : memref<128x128xbf16, #tpu.memory_space<vmem>>, vector<128x128xbf16>
    %c0_56 = arith.constant 0 : index
    %c0_57 = arith.constant 0 : index
    %135 = vector.load %arg8[%c0_56, %c0_57] : memref<1x128xf32, #tpu.memory_space<vmem>>, vector<1x128xf32>
    %136 = vector.broadcast %131 : vector<1x128xf32> to vector<128x128xf32>
    %137 = arith.mulf %97, %136 : vector<128x128xf32>
    %138 = vector.broadcast %133 : vector<1x128xf32> to vector<128x128xf32>
    %139 = arith.addf %137, %138 : vector<128x128xf32>
    %cst_58 = arith.constant 0.000000e+00 : f32
    %140 = vector.broadcast %cst_58 : f32 to vector<128x128xf32>
    %141 = arith.maximumf %139, %140 : vector<128x128xf32>
    %142 = arith.truncf %141 : vector<128x128xf32> to vector<128x128xbf16>
    %cst_59 = arith.constant dense<0.000000e+00> : vector<128x128xf32>
    %143 = tpu.matmul %142, %134, %cst_59 {dimension_numbers = #tpu.dot_dimension_numbers<[1], [0], [0], [1], [0, 0, 1, 1], [], []>} : vector<128x128xbf16>, vector<128x128xbf16>, vector<128x128xf32> -> vector<128x128xf32>
    %144 = vector.broadcast %135 : vector<1x128xf32> to vector<128x128xf32>
    %145 = arith.addf %143, %144 : vector<128x128xf32>
    %146 = math.tanh %145 : vector<128x128xf32>
    %c0_60 = arith.constant 0 : index
    %c0_61 = arith.constant 0 : index
    %147 = vector.load %arg9[%c0_60, %c0_61] : memref<256x128xf32, #tpu.memory_space<vmem>>, vector<128x128xf32>
    tpu.vector_store %arg9[%c0_60, %c0_61], %146 {strides = array<i32>} : memref<256x128xf32, #tpu.memory_space<vmem>>, vector<128x128xf32>,
    %148 = vector.broadcast %131 : vector<1x128xf32> to vector<128x128xf32>
    %149 = arith.mulf %107, %148 : vector<128x128xf32>
    %150 = vector.broadcast %133 : vector<1x128xf32> to vector<128x128xf32>
    %151 = arith.addf %149, %150 : vector<128x128xf32>
    %cst_62 = arith.constant 0.000000e+00 : f32
    %152 = vector.broadcast %cst_62 : f32 to vector<128x128xf32>
    %153 = arith.maximumf %151, %152 : vector<128x128xf32>
    %154 = arith.truncf %153 : vector<128x128xf32> to vector<128x128xbf16>
    %cst_63 = arith.constant dense<0.000000e+00> : vector<128x128xf32>
    %155 = tpu.matmul %154, %134, %cst_63 {dimension_numbers = #tpu.dot_dimension_numbers<[1], [0], [0], [1], [0, 0, 1, 1], [], []>} : vector<128x128xbf16>, vector<128x128xbf16>, vector<128x128xf32> -> vector<128x128xf32>
    %156 = vector.broadcast %135 : vector<1x128xf32> to vector<128x128xf32>
    %157 = arith.addf %155, %156 : vector<128x128xf32>
    %158 = math.tanh %157 : vector<128x128xf32>
    %c128_64 = arith.constant 128 : index
    %c0_65 = arith.constant 0 : index
    %159 = vector.load %arg9[%c128_64, %c0_65] : memref<256x128xf32, #tpu.memory_space<vmem>>, vector<128x128xf32>
    tpu.vector_store %arg9[%c128_64, %c0_65], %158 {strides = array<i32>} : memref<256x128xf32, #tpu.memory_space<vmem>>, vector<128x128xf32>,
    return
  }
}

</mosaic_0001>

<llo_original>
// kernel: tabular_generator.1
$region0: #{tabular_generator.1}
  #allocation0 [shape = 'u32[]', space=smem, size = 0x4, offset = 0x4, fixed_abs, tag = 'smem constant byte address 0x4 - core index']
  #allocation1 [shape = 'u32[144,128]{1,0:T(1,128)}', space=vmem, size = 0x12000, scoped, tag = 'internal scratch']
  %s0 = inlined_call_operand.vmem [shape: f32[256,32], index: 0, kind: input, shape index: {}]
  %s1 = inlined_call_operand.vmem [shape: bf16[32,128], index: 1, kind: input, shape index: {}]
  %s2 = inlined_call_operand.vmem [shape: f32[3,128], index: 2, kind: input, shape index: {}]
  %s3 = inlined_call_operand.vmem [shape: bf16[128,256], index: 3, kind: input, shape index: {}]
  %s4 = inlined_call_operand.vmem [shape: f32[3,256], index: 4, kind: input, shape index: {}]
  %s5 = inlined_call_operand.vmem [shape: bf16[256,128], index: 5, kind: input, shape index: {}]
  %s6 = inlined_call_operand.vmem [shape: f32[3,128], index: 6, kind: input, shape index: {}]
  %s7 = inlined_call_operand.vmem [shape: bf16[128,128], index: 7, kind: input, shape index: {}]
  %s8 = inlined_call_operand.vmem [shape: f32[1,128], index: 8, kind: input, shape index: {}]
  %s9 = inlined_call_operand.vmem [shape: f32[256,128], index: 9, kind: output, shape index: {}]
  %s10 = sld [smem:[#allocation0]]
  $region46: #{tabular_generator.1} parent=0
    _
  %s12 = ssub.s32 1, %s10
  %s13 = scalar_select 0, %s12, %s10
  // Predicated region
  $region2: #{tabular_generator.1} parent=0 // pred_check
    _
  $region3: #{tabular_generator.1} parent=0 // pred_check_branch
    %15 = sbr.rel (0) target = $region5
  $region4: #{tabular_generator.1} parent=0 // pred_region
    _
  $region5: #{tabular_generator.1} parent=0 // pred_fallthru
    _
  // Predicated region
  $region6: #{tabular_generator.1} parent=0 // pred_check
    _
  $region7: #{tabular_generator.1} parent=0 // pred_check_branch
    %17 = sbr.rel (0) target = $region9
  $region8: #{tabular_generator.1} parent=0 // pred_region
    _
  $region9: #{tabular_generator.1} parent=0 // pred_fallthru
    _
  // Predicated region
  $region10: #{tabular_generator.1} parent=0 // pred_check
    _
  $region11: #{tabular_generator.1} parent=0 // pred_check_branch
    %19 = sbr.rel (0) target = $region13
  $region12: #{tabular_generator.1} parent=0 // pred_region
    _
  $region13: #{tabular_generator.1} parent=0 // pred_fallthru
    _
  // Predicated region
  $region14: #{tabular_generator.1} parent=0 // pred_check
    _
  $region15: #{tabular_generator.1} parent=0 // pred_check_branch
    %21 = sbr.rel (0) target = $region17
  $region16: #{tabular_generator.1} parent=0 // pred_region
    _
  $region17: #{tabular_generator.1} parent=0 // pred_fallthru
    _
  // Predicated region
  $region18: #{tabular_generator.1} parent=0 // pred_check
    _
  $region19: #{tabular_generator.1} parent=0 // pred_check_branch
    %23 = sbr.rel (0) target = $region21
  $region20: #{tabular_generator.1} parent=0 // pred_region
    _
  $region21: #{tabular_generator.1} parent=0 // pred_fallthru
    _
  // Predicated region
  $region22: #{tabular_generator.1} parent=0 // pred_check
    _
  $region23: #{tabular_generator.1} parent=0 // pred_check_branch
    %25 = sbr.rel (0) target = $region25
  $region24: #{tabular_generator.1} parent=0 // pred_region
    _
  $region25: #{tabular_generator.1} parent=0 // pred_fallthru
    _
  // Predicated region
  $region26: #{tabular_generator.1} parent=0 // pred_check
    _
  $region27: #{tabular_generator.1} parent=0 // pred_check_branch
    %27 = sbr.rel (0) target = $region29
  $region28: #{tabular_generator.1} parent=0 // pred_region
    _
  $region29: #{tabular_generator.1} parent=0 // pred_fallthru
    _
  // Predicated region
  $region30: #{tabular_generator.1} parent=0 // pred_check
    _
  $region31: #{tabular_generator.1} parent=0 // pred_check_branch
    %29 = sbr.rel (0) target = $region33
  $region32: #{tabular_generator.1} parent=0 // pred_region
    _
  $region33: #{tabular_generator.1} parent=0 // pred_fallthru
    _
  // Predicated region
  $region34: #{tabular_generator.1} parent=0 // pred_check
    _
  $region35: #{tabular_generator.1} parent=0 // pred_check_branch
    %31 = sbr.rel (0) target = $region37
  $region36: #{tabular_generator.1} parent=0 // pred_region
    _
  $region37: #{tabular_generator.1} parent=0 // pred_fallthru
    _
  %v33 = vld [vmem:[%s1] sm:$0xf]
  %v34 = vld [vmem:[%s1 + $0x4] sm:$0xf]
  %v35 = vld [vmem:[%s1 + $0x8] sm:$0xf]
  %v36 = vld [vmem:[%s1 + $0xc] sm:$0xf]
  %v37 = vld [vmem:[%s2] sm:$0x1]
  %v38 = vld [vmem:[%s0] sm:$0xff]
  %v39 = vld [vmem:[%s0 + $0x8] sm:$0xff]
  %v40 = vld [vmem:[%s0 + $0x10] sm:$0xff]
  %v41 = vld [vmem:[%s0 + $0x18] sm:$0xff]
  %v42 = vld [vmem:[%s0 + $0x20] sm:$0xff]
  %v43 = vld [vmem:[%s0 + $0x28] sm:$0xff]
  %v44 = vld [vmem:[%s0 + $0x30] sm:$0xff]
  %v45 = vld [vmem:[%s0 + $0x38] sm:$0xff]
  %v46 = vld [vmem:[%s0 + $0x40] sm:$0xff]
  %v47 = vld [vmem:[%s0 + $0x48] sm:$0xff]
  %v48 = vld [vmem:[%s0 + $0x50] sm:$0xff]
  %v49 = vld [vmem:[%s0 + $0x58] sm:$0xff]
  %v50 = vld [vmem:[%s0 + $0x60] sm:$0xff]
  %v51 = vld [vmem:[%s0 + $0x68] sm:$0xff]
  %v52 = vld [vmem:[%s0 + $0x70] sm:$0xff]
  %v53 = vld [vmem:[%s0 + $0x78] sm:$0xff]
  %v54 = vpack.c.bf16 %v39, %v38
  %v55 = vpack.c.bf16 %v41, %v40
  %v56 = vpack.c.bf16 %v43, %v42
  %v57 = vpack.c.bf16 %v45, %v44
  %v58 = vpack.c.bf16 %v47, %v46
  %v59 = vpack.c.bf16 %v49, %v48
  %v60 = vpack.c.bf16 %v51, %v50
  %v61 = vpack.c.bf16 %v53, %v52
  %v62 = vlaneseq
  %v63 = vshrl.u32 %v62, 7
  %v64 = vsub.s32 0, %v63
  %v65 = vrot.slane %v37, %v64
  %v70 = vunpack.c.l.b16 %v33
  %v71 = vunpack.c.l.b16 %v34
  %v72 = vunpack.c.l.b16 %v35
  %v73 = vunpack.c.l.b16 %v36
  %v74 = vpack.c.b16 %v71, %v70
  %v75 = vpack.c.b16 %v73, %v72
  %vm78 = vcmask 261120
  %v80 = vsel %vm78, %v54, 0
  %v83 = vsel %vm78, %v55, 0
  %v86 = vsel %vm78, %v56, 0
  %v89 = vsel %vm78, %v57, 0
  %v92 = vsel %vm78, %v58, 0
  %v95 = vsel %vm78, %v59, 0
  %v98 = vsel %vm78, %v60, 0
  %v101 = vsel %vm78, %v61, 0
  %103 = vmatprep.subr.bf16.mxu0 0
  %104 = vmatpush1.bf16.msra.mxu0 0
  %105 = vmatprep.subr.bf16.mxu0 0
  %106 = vmatpush1.bf16.msra.mxu0 0
  %107 = vmatprep.subr.bf16.mxu0 0
  %108 = vmatpush1.bf16.msra.mxu0 0
  %109 = vmatprep.subr.bf16.mxu0 0
  %110 = vmatpush1.bf16.msra.mxu0 0
  %111 = vmatprep.subr.bf16.mxu0 0
  %112 = vmatpush1.bf16.msra.mxu0 0
  %113 = vmatprep.subr.bf16.mxu0 0
  %114 = vmatpush1.bf16.msra.mxu0 0
  %115 = vmatprep.subr.bf16.mxu0 0
  %116 = vmatpush1.bf16.msra.mxu0 %v75
  %117 = vmatprep.subr.bf16.mxu0 0
  %118 = vmatpush1.bf16.msra.mxu0 %v74
  %119 = vmatprep.subr.bf16.mxu0 0
  %120 = vmatpush2.bf16.msra.mxu0 0
  %121 = vmatprep.subr.bf16.mxu0 0
  %122 = vmatpush2.bf16.msra.mxu0 0
  %123 = vmatprep.subr.bf16.mxu0 0
  %124 = vmatpush2.bf16.msra.mxu0 0
  %125 = vmatprep.subr.bf16.mxu0 0
  %126 = vmatpush2.bf16.msra.mxu0 0
  %127 = vmatprep.subr.bf16.mxu0 0
  %128 = vmatpush2.bf16.msra.mxu0 0
  %129 = vmatprep.subr.bf16.mxu0 0
  %130 = vmatpush2.bf16.msra.mxu0 0
  %131 = vmatprep.subr.bf16.mxu0 0
  %132 = vmatpush2.bf16.msra.mxu0 0
  %133 = vmatprep.subr.bf16.mxu0 0
  %134 = vmatpush2.bf16.msra.mxu0 0
  %135 = vmatprep.mubr.bf16.mxu0 0
  %136 = vmatmul.mubr.bf16.gmra.mxu0 %v80
  %v137 = vpop.f32.mrf.mxu0
  %v138 = vadd.f32 %v65, %v137
  %v139 = vpop.f32.mrf.mxu0
  %v140 = vpop.f32.mrf.mxu0
  %v141 = vadd.f32 %v65, %v140
  %v142 = vpop.f32.mrf.mxu0
  %143 = vmatprep.mubr.bf16.mxu0 0
  %144 = vmatmul.mubr.bf16.gmra.mxu0 %v83
  %v145 = vpop.f32.mrf.mxu0
  %v146 = vadd.f32 %v65, %v145
  %v147 = vpop.f32.mrf.mxu0
  %v148 = vpop.f32.mrf.mxu0
  %v149 = vadd.f32 %v65, %v148
  %v150 = vpop.f32.mrf.mxu0
  %151 = vmatprep.mubr.bf16.mxu0 0
  %152 = vmatmul.mubr.bf16.gmra.mxu0 %v86
  %v153 = vpop.f32.mrf.mxu0
  %v154 = vadd.f32 %v65, %v153
  %v155 = vpop.f32.mrf.mxu0
  %v156 = vpop.f32.mrf.mxu0
  %v157 = vadd.f32 %v65, %v156
  %v158 = vpop.f32.mrf.mxu0
  %159 = vmatprep.mubr.bf16.mxu0 0
  %160 = vmatmul.mubr.bf16.gmra.mxu0 %v89
  %v161 = vpop.f32.mrf.mxu0
  %v162 = vadd.f32 %v65, %v161
  %v163 = vpop.f32.mrf.mxu0
  %v164 = vpop.f32.mrf.mxu0
  %v165 = vadd.f32 %v65, %v164
  %v166 = vpop.f32.mrf.mxu0
  %167 = vmatprep.mubr.bf16.mxu0 0
  %168 = vmatmul.mubr.bf16.gmra.mxu0 %v92
  %v169 = vpop.f32.mrf.mxu0
  %v170 = vadd.f32 %v65, %v169
  %v171 = vpop.f32.mrf.mxu0
  %v172 = vpop.f32.mrf.mxu0
  %v173 = vadd.f32 %v65, %v172
  %v174 = vpop.f32.mrf.mxu0
  %175 = vmatprep.mubr.bf16.mxu0 0
  %176 = vmatmul.mubr.bf16.gmra.mxu0 %v95
  %v177 = vpop.f32.mrf.mxu0
  %v178 = vadd.f32 %v65, %v177
  %v179 = vpop.f32.mrf.mxu0
  %v180 = vpop.f32.mrf.mxu0
  %v181 = vadd.f32 %v65, %v180
  %v182 = vpop.f32.mrf.mxu0
  %183 = vmatprep.mubr.bf16.mxu0 0
  %184 = vmatmul.mubr.bf16.gmra.mxu0 %v98
  %v185 = vpop.f32.mrf.mxu0
  %v186 = vadd.f32 %v65, %v185
  %v187 = vpop.f32.mrf.mxu0
  %v188 = vpop.f32.mrf.mxu0
  %v189 = vadd.f32 %v65, %v188
  %v190 = vpop.f32.mrf.mxu0
  %191 = vmatprep.mubr.bf16.mxu0 0
  %192 = vmatmul.mubr.bf16.gmra.mxu0 %v101
  %v193 = vpop.f32.mrf.mxu0
  %v194 = vadd.f32 %v65, %v193
  %v195 = vpop.f32.mrf.mxu0
  %v196 = vpop.f32.mrf.mxu0
  %v197 = vadd.f32 %v65, %v196
  %v198 = vpop.f32.mrf.mxu0
  %199 = vdwg.mxu0
  %v200 = vld [vmem:[%s0 + $0x80] sm:$0xff]
  %v201 = vld [vmem:[%s0 + $0x88] sm:$0xff]
  %v202 = vld [vmem:[%s0 + $0x90] sm:$0xff]
  %v203 = vld [vmem:[%s0 + $0x98] sm:$0xff]
  %v204 = vld [vmem:[%s0 + $0xa0] sm:$0xff]
  %v205 = vld [vmem:[%s0 + $0xa8] sm:$0xff]
  %v206 = vld [vmem:[%s0 + $0xb0] sm:$0xff]
  %v207 = vld [vmem:[%s0 + $0xb8] sm:$0xff]
  %v208 = vld [vmem:[%s0 + $0xc0] sm:$0xff]
  %v209 = vld [vmem:[%s0 + $0xc8] sm:$0xff]
  %v210 = vld [vmem:[%s0 + $0xd0] sm:$0xff]
  %v211 = vld [vmem:[%s0 + $0xd8] sm:$0xff]
  %v212 = vld [vmem:[%s0 + $0xe0] sm:$0xff]
  %v213 = vld [vmem:[%s0 + $0xe8] sm:$0xff]
  %v214 = vld [vmem:[%s0 + $0xf0] sm:$0xff]
  %v215 = vld [vmem:[%s0 + $0xf8] sm:$0xff]
  %v216 = vpack.c.bf16 %v201, %v200
  %v217 = vpack.c.bf16 %v203, %v202
  %v218 = vpack.c.bf16 %v205, %v204
  %v219 = vpack.c.bf16 %v207, %v206
  %v220 = vpack.c.bf16 %v209, %v208
  %v221 = vpack.c.bf16 %v211, %v210
  %v222 = vpack.c.bf16 %v213, %v212
  %v223 = vpack.c.bf16 %v215, %v214
  %v225 = vsel %vm78, %v216, 0
  %v228 = vsel %vm78, %v217, 0
  %v231 = vsel %vm78, %v218, 0
  %v234 = vsel %vm78, %v219, 0
  %v237 = vsel %vm78, %v220, 0
  %v240 = vsel %vm78, %v221, 0
  %v243 = vsel %vm78, %v222, 0
  %v246 = vsel %vm78, %v223, 0
  %248 = vmatprep.subr.bf16.mxu0 0
  %249 = vmatpush1.bf16.msra.mxu0 0
  %250 = vmatprep.subr.bf16.mxu0 0
  %251 = vmatpush1.bf16.msra.mxu0 0
  %252 = vmatprep.subr.bf16.mxu0 0
  %253 = vmatpush1.bf16.msra.mxu0 0
  %254 = vmatprep.subr.bf16.mxu0 0
  %255 = vmatpush1.bf16.msra.mxu0 0
  %256 = vmatprep.subr.bf16.mxu0 0
  %257 = vmatpush1.bf16.msra.mxu0 0
  %258 = vmatprep.subr.bf16.mxu0 0
  %259 = vmatpush1.bf16.msra.mxu0 0
  %260 = vmatprep.subr.bf16.mxu0 0
  %261 = vmatpush1.bf16.msra.mxu0 %v75
  %262 = vmatprep.subr.bf16.mxu0 0
  %263 = vmatpush1.bf16.msra.mxu0 %v74
  %264 = vmatprep.subr.bf16.mxu0 0
  %265 = vmatpush2.bf16.msra.mxu0 0
  %266 = vmatprep.subr.bf16.mxu0 0
  %267 = vmatpush2.bf16.msra.mxu0 0
  %268 = vmatprep.subr.bf16.mxu0 0
  %269 = vmatpush2.bf16.msra.mxu0 0
  %270 = vmatprep.subr.bf16.mxu0 0
  %271 = vmatpush2.bf16.msra.mxu0 0
  %272 = vmatprep.subr.bf16.mxu0 0
  %273 = vmatpush2.bf16.msra.mxu0 0
  %274 = vmatprep.subr.bf16.mxu0 0
  %275 = vmatpush2.bf16.msra.mxu0 0
  %276 = vmatprep.subr.bf16.mxu0 0
  %277 = vmatpush2.bf16.msra.mxu0 0
  %278 = vmatprep.subr.bf16.mxu0 0
  %279 = vmatpush2.bf16.msra.mxu0 0
  %280 = vmatprep.mubr.bf16.mxu0 0
  %281 = vmatmul.mubr.bf16.gmra.mxu0 %v225
  %v282 = vpop.f32.mrf.mxu0
  %v283 = vadd.f32 %v65, %v282
  %v284 = vpop.f32.mrf.mxu0
  %v285 = vpop.f32.mrf.mxu0
  %v286 = vadd.f32 %v65, %v285
  %v287 = vpop.f32.mrf.mxu0
  %288 = vmatprep.mubr.bf16.mxu0 0
  %289 = vmatmul.mubr.bf16.gmra.mxu0 %v228
  %v290 = vpop.f32.mrf.mxu0
  %v291 = vadd.f32 %v65, %v290
  %v292 = vpop.f32.mrf.mxu0
  %v293 = vpop.f32.mrf.mxu0
  %v294 = vadd.f32 %v65, %v293
  %v295 = vpop.f32.mrf.mxu0
  %296 = vmatprep.mubr.bf16.mxu0 0
  %297 = vmatmul.mubr.bf16.gmra.mxu0 %v231
  %v298 = vpop.f32.mrf.mxu0
  %v299 = vadd.f32 %v65, %v298
  %v300 = vpop.f32.mrf.mxu0
  %v301 = vpop.f32.mrf.mxu0
  %v302 = vadd.f32 %v65, %v301
  %v303 = vpop.f32.mrf.mxu0
  %304 = vmatprep.mubr.bf16.mxu0 0
  %305 = vmatmul.mubr.bf16.gmra.mxu0 %v234
  %v306 = vpop.f32.mrf.mxu0
  %v307 = vadd.f32 %v65, %v306
  %v308 = vpop.f32.mrf.mxu0
  %v309 = vpop.f32.mrf.mxu0
  %v310 = vadd.f32 %v65, %v309
  %v311 = vpop.f32.mrf.mxu0
  %312 = vmatprep.mubr.bf16.mxu0 0
  %313 = vmatmul.mubr.bf16.gmra.mxu0 %v237
  %v314 = vpop.f32.mrf.mxu0
  %v315 = vadd.f32 %v65, %v314
  %v316 = vpop.f32.mrf.mxu0
  %v317 = vpop.f32.mrf.mxu0
  %v318 = vadd.f32 %v65, %v317
  %v319 = vpop.f32.mrf.mxu0
  %320 = vmatprep.mubr.bf16.mxu0 0
  %321 = vmatmul.mubr.bf16.gmra.mxu0 %v240
  %v322 = vpop.f32.mrf.mxu0
  %v323 = vadd.f32 %v65, %v322
  %v324 = vpop.f32.mrf.mxu0
  %v325 = vpop.f32.mrf.mxu0
  %v326 = vadd.f32 %v65, %v325
  %v327 = vpop.f32.mrf.mxu0
  %328 = vmatprep.mubr.bf16.mxu0 0
  %329 = vmatmul.mubr.bf16.gmra.mxu0 %v243
  %v330 = vpop.f32.mrf.mxu0
  %v331 = vadd.f32 %v65, %v330
  %v332 = vpop.f32.mrf.mxu0
  %v333 = vpop.f32.mrf.mxu0
  %v334 = vadd.f32 %v65, %v333
  %v335 = vpop.f32.mrf.mxu0
  %336 = vmatprep.mubr.bf16.mxu0 0
  %337 = vmatmul.mubr.bf16.gmra.mxu0 %v246
  %v338 = vpop.f32.mrf.mxu0
  %v339 = vadd.f32 %v65, %v338
  %v340 = vpop.f32.mrf.mxu0
  %v341 = vpop.f32.mrf.mxu0
  %v342 = vadd.f32 %v65, %v341
  %v343 = vpop.f32.mrf.mxu0
  %344 = vdwg.mxu0
  %v345 = vld [vmem:[%s2 + $0x1] sm:$0x1]
  %v346 = vld [vmem:[%s2 + $0x2] sm:$0x1]
  %v347 = vadd.f32 %v138, %v141
  %v348 = vadd.f32 %v347, %v146
  %v349 = vadd.f32 %v348, %v149
  %v350 = vadd.f32 %v349, %v154
  %v351 = vadd.f32 %v350, %v157
  %v352 = vadd.f32 %v351, %v162
  %v353 = vadd.f32 %v352, %v165
  %v354 = vadd.f32 %v353, %v170
  %v355 = vadd.f32 %v354, %v173
  %v356 = vadd.f32 %v355, %v178
  %v357 = vadd.f32 %v356, %v181
  %v358 = vadd.f32 %v357, %v186
  %v359 = vadd.f32 %v358, %v189
  %v360 = vadd.f32 %v359, %v194
  %v361 = vadd.f32 %v360, %v197
  %v362 = vrot.slane %v361, 4
  %v363 = vadd.f32 %v361, %v362
  %v364 = vrot.slane %v363, 2
  %v365 = vadd.f32 %v363, %v364
  %v366 = vrot.slane %v365, 1
  %v367 = vadd.f32 %v365, %v366
  %v368 = vmul.f32 %v138, %v138
  %v369 = vmul.f32 %v141, %v141
  %v370 = vmul.f32 %v146, %v146
  %v371 = vmul.f32 %v149, %v149
  %v372 = vmul.f32 %v154, %v154
  %v373 = vmul.f32 %v157, %v157
  %v374 = vmul.f32 %v162, %v162
  %v375 = vmul.f32 %v165, %v165
  %v376 = vmul.f32 %v170, %v170
  %v377 = vmul.f32 %v173, %v173
  %v378 = vmul.f32 %v178, %v178
  %v379 = vmul.f32 %v181, %v181
  %v380 = vmul.f32 %v186, %v186
  %v381 = vmul.f32 %v189, %v189
  %v382 = vmul.f32 %v194, %v194
  %v383 = vmul.f32 %v197, %v197
  %v384 = vadd.f32 %v368, %v369
  %v385 = vadd.f32 %v384, %v370
  %v386 = vadd.f32 %v385, %v371
  %v387 = vadd.f32 %v386, %v372
  %v388 = vadd.f32 %v387, %v373
  %v389 = vadd.f32 %v388, %v374
  %v390 = vadd.f32 %v389, %v375
  %v391 = vadd.f32 %v390, %v376
  %v392 = vadd.f32 %v391, %v377
  %v393 = vadd.f32 %v392, %v378
  %v394 = vadd.f32 %v393, %v379
  %v395 = vadd.f32 %v394, %v380
  %v396 = vadd.f32 %v395, %v381
  %v397 = vadd.f32 %v396, %v382
  %v398 = vadd.f32 %v397, %v383
  %v399 = vrot.slane %v398, 4
  %v400 = vadd.f32 %v398, %v399
  %v401 = vrot.slane %v400, 2
  %v402 = vadd.f32 %v400, %v401
  %v403 = vrot.slane %v402, 1
  %v404 = vadd.f32 %v402, %v403
  %v405 = vadd.f32 %v283, %v286
  %v406 = vadd.f32 %v405, %v291
  %v407 = vadd.f32 %v406, %v294
  %v408 = vadd.f32 %v407, %v299
  %v409 = vadd.f32 %v408, %v302
  %v410 = vadd.f32 %v409, %v307
  %v411 = vadd.f32 %v410, %v310
  %v412 = vadd.f32 %v411, %v315
  %v413 = vadd.f32 %v412, %v318
  %v414 = vadd.f32 %v413, %v323
  %v415 = vadd.f32 %v414, %v326
  %v416 = vadd.f32 %v415, %v331
  %v417 = vadd.f32 %v416, %v334
  %v418 = vadd.f32 %v417, %v339
  %v419 = vadd.f32 %v418, %v342
  %v420 = vrot.slane %v419, 4
  %v421 = vadd.f32 %v419, %v420
  %v422 = vrot.slane %v421, 2
  %v423 = vadd.f32 %v421, %v422
  %v424 = vrot.slane %v423, 1
  %v425 = vadd.f32 %v423, %v424
  %v426 = vadd.f32 %v367, %v425
  %v427 = vmul.f32 %v283, %v283
  %v428 = vmul.f32 %v286, %v286
  %v429 = vmul.f32 %v291, %v291
  %v430 = vmul.f32 %v294, %v294
  %v431 = vmul.f32 %v299, %v299
  %v432 = vmul.f32 %v302, %v302
  %v433 = vmul.f32 %v307, %v307
  %v434 = vmul.f32 %v310, %v310
  %v435 = vmul.f32 %v315, %v315
  %v436 = vmul.f32 %v318, %v318
  %v437 = vmul.f32 %v323, %v323
  %v438 = vmul.f32 %v326, %v326
  %v439 = vmul.f32 %v331, %v331
  %v440 = vmul.f32 %v334, %v334
  %v441 = vmul.f32 %v339, %v339
  %v442 = vmul.f32 %v342, %v342
  %v443 = vadd.f32 %v427, %v428
  %v444 = vadd.f32 %v443, %v429
  %v445 = vadd.f32 %v444, %v430
  %v446 = vadd.f32 %v445, %v431
  %v447 = vadd.f32 %v446, %v432
  %v448 = vadd.f32 %v447, %v433
  %v449 = vadd.f32 %v448, %v434
  %v450 = vadd.f32 %v449, %v435
  %v451 = vadd.f32 %v450, %v436
  %v452 = vadd.f32 %v451, %v437
  %v453 = vadd.f32 %v452, %v438
  %v454 = vadd.f32 %v453, %v439
  %v455 = vadd.f32 %v454, %v440
  %v456 = vadd.f32 %v455, %v441
  %v457 = vadd.f32 %v456, %v442
  %v458 = vrot.slane %v457, 4
  %v459 = vadd.f32 %v457, %v458
  %v460 = vrot.slane %v459, 2
  %v461 = vadd.f32 %v459, %v460
  %v462 = vrot.slane %v461, 1
  %v463 = vadd.f32 %v461, %v462
  %v464 = vadd.f32 %v404, %v463
  %v465 = vmul.f32 %v426, 0.00390625
  %v466 = vmul.f32 %v464, 0.00390625
  %v467 = vmul.f32 %v465, %v465
  %v468 = vsub.f32 %v466, %v467
  %v469 = vadd.f32 %v468, 1e-05
  %v470 = vrsqrt.pop %v469
  %v471 = vmul.f32 %v345, %v470
  %v472 = vmul.f32 %v465, %v471
  %v473 = vsub.f32 %v346, %v472
  %v474 = vld [vmem:[%s4] ss:$4 sm:$0x3]
  %v475 = vld [vmem:[%s3] sm:$0xff]
  %v476 = vld [vmem:[%s3 + $0x8] sm:$0xff]
  %v477 = vld [vmem:[%s3 + $0x10] sm:$0xff]
  %v478 = vld [vmem:[%s3 + $0x18] sm:$0xff]
  %v479 = vld [vmem:[%s3 + $0x20] sm:$0xff]
  %v480 = vld [vmem:[%s3 + $0x28] sm:$0xff]
  %v481 = vld [vmem:[%s3 + $0x30] sm:$0xff]
  %v482 = vld [vmem:[%s3 + $0x38] sm:$0xff]
  %v483 = vld [vmem:[%s3 + $0x40] sm:$0xff]
  %v484 = vld [vmem:[%s3 + $0x48] sm:$0xff]
  %v485 = vld [vmem:[%s3 + $0x50] sm:$0xff]
  %v486 = vld [vmem:[%s3 + $0x58] sm:$0xff]
  %v487 = vld [vmem:[%s3 + $0x60] sm:$0xff]
  %v488 = vld [vmem:[%s3 + $0x68] sm:$0xff]
  %v489 = vld [vmem:[%s3 + $0x70] sm:$0xff]
  %v490 = vld [vmem:[%s3 + $0x78] sm:$0xff]
  %v491 = vlaneseq
  %v492 = vshrl.u32 %v491, 7
  %v493 = vsub.s32 0, %v492
  %v494 = vrot.slane %v471, %v493
  %v495 = vmul.f32 %v138, %v494
  %v496 = vmul.f32 %v141, %v494
  %v497 = vmul.f32 %v146, %v494
  %v498 = vmul.f32 %v149, %v494
  %v499 = vmul.f32 %v154, %v494
  %v500 = vmul.f32 %v157, %v494
  %v501 = vmul.f32 %v162, %v494
  %v502 = vmul.f32 %v165, %v494
  %v503 = vmul.f32 %v170, %v494
  %v504 = vmul.f32 %v173, %v494
  %v505 = vmul.f32 %v178, %v494
  %v506 = vmul.f32 %v181, %v494
  %v507 = vmul.f32 %v186, %v494
  %v508 = vmul.f32 %v189, %v494
  %v509 = vmul.f32 %v194, %v494
  %v510 = vmul.f32 %v197, %v494
  %v511 = vlaneseq
  %v512 = vshrl.u32 %v511, 7
  %v513 = vsub.s32 0, %v512
  %v514 = vrot.slane %v473, %v513
  %v515 = vadd.f32 %v495, %v514
  %v516 = vadd.f32 %v496, %v514
  %v517 = vadd.f32 %v497, %v514
  %v518 = vadd.f32 %v498, %v514
  %v519 = vadd.f32 %v499, %v514
  %v520 = vadd.f32 %v500, %v514
  %v521 = vadd.f32 %v501, %v514
  %v522 = vadd.f32 %v502, %v514
  %v523 = vadd.f32 %v503, %v514
  %v524 = vadd.f32 %v504, %v514
  %v525 = vadd.f32 %v505, %v514
  %v526 = vadd.f32 %v506, %v514
  %v527 = vadd.f32 %v507, %v514
  %v528 = vadd.f32 %v508, %v514
  %v529 = vadd.f32 %v509, %v514
  %v530 = vadd.f32 %v510, %v514
  %v531 = vmax.f32 %v515, 0.0
  %v532 = vmax.f32 %v516, 0.0
  %v533 = vmax.f32 %v517, 0.0
  %v534 = vmax.f32 %v518, 0.0
  %v535 = vmax.f32 %v519, 0.0
  %v536 = vmax.f32 %v520, 0.0
  %v537 = vmax.f32 %v521, 0.0
  %v538 = vmax.f32 %v522, 0.0
  %v539 = vmax.f32 %v523, 0.0
  %v540 = vmax.f32 %v524, 0.0
  %v541 = vmax.f32 %v525, 0.0
  %v542 = vmax.f32 %v526, 0.0
  %v543 = vmax.f32 %v527, 0.0
  %v544 = vmax.f32 %v528, 0.0
  %v545 = vmax.f32 %v529, 0.0
  %v546 = vmax.f32 %v530, 0.0
  %v547 = vpack.c.bf16 %v532, %v531
  %v548 = vpack.c.bf16 %v534, %v533
  %v549 = vpack.c.bf16 %v536, %v535
  %v550 = vpack.c.bf16 %v538, %v537
  %v551 = vpack.c.bf16 %v540, %v539
  %v552 = vpack.c.bf16 %v542, %v541
  %v553 = vpack.c.bf16 %v544, %v543
  %v554 = vpack.c.bf16 %v546, %v545
  %v556 = vlaneseq
  %v557 = vshrl.u32 %v556, 7
  %v558 = vsub.s32 0, %v557
  %v559 = vrot.slane %v474, %v558
  %v560 = vlaneseq
  %v561 = vshrl.u32 %v560, 7
  %v562 = vsub.s32 1, %v561
  %v563 = vrot.slane %v474, %v562
  %v582 = vunpack.c.l.b16 %v475
  %v583 = vunpack.c.h.b16 %v475
  %v584 = vunpack.c.l.b16 %v476
  %v585 = vunpack.c.h.b16 %v476
  %v586 = vunpack.c.l.b16 %v477
  %v587 = vunpack.c.h.b16 %v477
  %v588 = vunpack.c.l.b16 %v478
  %v589 = vunpack.c.h.b16 %v478
  %v590 = vunpack.c.l.b16 %v479
  %v591 = vunpack.c.h.b16 %v479
  %v592 = vunpack.c.l.b16 %v480
  %v593 = vunpack.c.h.b16 %v480
  %v594 = vunpack.c.l.b16 %v481
  %v595 = vunpack.c.h.b16 %v481
  %v596 = vunpack.c.l.b16 %v482
  %v597 = vunpack.c.h.b16 %v482
  %v598 = vunpack.c.l.b16 %v483
  %v599 = vunpack.c.h.b16 %v483
  %v600 = vunpack.c.l.b16 %v484
  %v601 = vunpack.c.h.b16 %v484
  %v602 = vunpack.c.l.b16 %v485
  %v603 = vunpack.c.h.b16 %v485
  %v604 = vunpack.c.l.b16 %v486
  %v605 = vunpack.c.h.b16 %v486
  %v606 = vunpack.c.l.b16 %v487
  %v607 = vunpack.c.h.b16 %v487
  %v608 = vunpack.c.l.b16 %v488
  %v609 = vunpack.c.h.b16 %v488
  %v610 = vunpack.c.l.b16 %v489
  %v611 = vunpack.c.h.b16 %v489
  %v612 = vunpack.c.l.b16 %v490
  %v613 = vunpack.c.h.b16 %v490
  %v614 = vpack.c.b16 %v584, %v582
  %v615 = vpack.c.b16 %v585, %v583
  %v616 = vpack.c.b16 %v588, %v586
  %v617 = vpack.c.b16 %v589, %v587
  %v618 = vpack.c.b16 %v592, %v590
  %v619 = vpack.c.b16 %v593, %v591
  %v620 = vpack.c.b16 %v596, %v594
  %v621 = vpack.c.b16 %v597, %v595
  %v622 = vpack.c.b16 %v600, %v598
  %v623 = vpack.c.b16 %v601, %v599
  %v624 = vpack.c.b16 %v604, %v602
  %v625 = vpack.c.b16 %v605, %v603
  %v626 = vpack.c.b16 %v608, %v606
  %v627 = vpack.c.b16 %v609, %v607
  %v628 = vpack.c.b16 %v612, %v610
  %v629 = vpack.c.b16 %v613, %v611
  %646 = vmatprep.subr.bf16.mxu0 %v629
  %647 = vmatpush1.bf16.msra.mxu0 %v628
  %648 = vmatprep.subr.bf16.mxu0 %v627
  %649 = vmatpush1.bf16.msra.mxu0 %v626
  %650 = vmatprep.subr.bf16.mxu0 %v625
  %651 = vmatpush1.bf16.msra.mxu0 %v624
  %652 = vmatprep.subr.bf16.mxu0 %v623
  %653 = vmatpush1.bf16.msra.mxu0 %v622
  %654 = vmatprep.subr.bf16.mxu0 %v621
  %655 = vmatpush1.bf16.msra.mxu0 %v620
  %656 = vmatprep.subr.bf16.mxu0 %v619
  %657 = vmatpush1.bf16.msra.mxu0 %v618
  %658 = vmatprep.subr.bf16.mxu0 %v617
  %659 = vmatpush1.bf16.msra.mxu0 %v616
  %660 = vmatprep.subr.bf16.mxu0 %v615
  %661 = vmatpush1.bf16.msra.mxu0 %v614
  %662 = vmatprep.subr.bf16.mxu0 0
  %663 = vmatpush2.bf16.msra.mxu0 0
  %664 = vmatprep.subr.bf16.mxu0 0
  %665 = vmatpush2.bf16.msra.mxu0 0
  %666 = vmatprep.subr.bf16.mxu0 0
  %667 = vmatpush2.bf16.msra.mxu0 0
  %668 = vmatprep.subr.bf16.mxu0 0
  %669 = vmatpush2.bf16.msra.mxu0 0
  %670 = vmatprep.subr.bf16.mxu0 0
  %671 = vmatpush2.bf16.msra.mxu0 0
  %672 = vmatprep.subr.bf16.mxu0 0
  %673 = vmatpush2.bf16.msra.mxu0 0
  %674 = vmatprep.subr.bf16.mxu0 0
  %675 = vmatpush2.bf16.msra.mxu0 0
  %676 = vmatprep.subr.bf16.mxu0 0
  %677 = vmatpush2.bf16.msra.mxu0 0
  %678 = vmatprep.mubr.bf16.mxu0 0
  %679 = vmatmul.mubr.bf16.gmra.mxu0 %v547
  %v680 = vpop.f32.mrf.mxu0
  %v681 = vadd.f32 %v559, %v680
  %v682 = vpop.f32.mrf.mxu0
  %v683 = vadd.f32 %v563, %v682
  %v684 = vpop.f32.mrf.mxu0
  %v685 = vadd.f32 %v559, %v684
  %v686 = vpop.f32.mrf.mxu0
  %v687 = vadd.f32 %v563, %v686
  %688 = vmatprep.mubr.bf16.mxu0 0
  %689 = vmatmul.mubr.bf16.gmra.mxu0 %v548
  %v690 = vpop.f32.mrf.mxu0
  %v691 = vadd.f32 %v559, %v690
  %v692 = vpop.f32.mrf.mxu0
  %v693 = vadd.f32 %v563, %v692
  %v694 = vpop.f32.mrf.mxu0
  %v695 = vadd.f32 %v559, %v694
  %v696 = vpop.f32.mrf.mxu0
  %v697 = vadd.f32 %v563, %v696
  %698 = vmatprep.mubr.bf16.mxu0 0
  %699 = vmatmul.mubr.bf16.gmra.mxu0 %v549
  %v700 = vpop.f32.mrf.mxu0
  %v701 = vadd.f32 %v559, %v700
  %v702 = vpop.f32.mrf.mxu0
  %v703 = vadd.f32 %v563, %v702
  %v704 = vpop.f32.mrf.mxu0
  %v705 = vadd.f32 %v559, %v704
  %v706 = vpop.f32.mrf.mxu0
  %v707 = vadd.f32 %v563, %v706
  %708 = vmatprep.mubr.bf16.mxu0 0
  %709 = vmatmul.mubr.bf16.gmra.mxu0 %v550
  %v710 = vpop.f32.mrf.mxu0
  %v711 = vadd.f32 %v559, %v710
  %v712 = vpop.f32.mrf.mxu0
  %v713 = vadd.f32 %v563, %v712
  %v714 = vpop.f32.mrf.mxu0
  %v715 = vadd.f32 %v559, %v714
  %v716 = vpop.f32.mrf.mxu0
  %v717 = vadd.f32 %v563, %v716
  %718 = vmatprep.mubr.bf16.mxu0 0
  %719 = vmatmul.mubr.bf16.gmra.mxu0 %v551
  %v720 = vpop.f32.mrf.mxu0
  %v721 = vadd.f32 %v559, %v720
  %v722 = vpop.f32.mrf.mxu0
  %v723 = vadd.f32 %v563, %v722
  %v724 = vpop.f32.mrf.mxu0
  %v725 = vadd.f32 %v559, %v724
  %v726 = vpop.f32.mrf.mxu0
  %v727 = vadd.f32 %v563, %v726
  %728 = vmatprep.mubr.bf16.mxu0 0
  %729 = vmatmul.mubr.bf16.gmra.mxu0 %v552
  %v730 = vpop.f32.mrf.mxu0
  %v731 = vadd.f32 %v559, %v730
  %v732 = vpop.f32.mrf.mxu0
  %v733 = vadd.f32 %v563, %v732
  %v734 = vpop.f32.mrf.mxu0
  %v735 = vadd.f32 %v559, %v734
  %v736 = vpop.f32.mrf.mxu0
  %v737 = vadd.f32 %v563, %v736
  %738 = vmatprep.mubr.bf16.mxu0 0
  %739 = vmatmul.mubr.bf16.gmra.mxu0 %v553
  %v740 = vpop.f32.mrf.mxu0
  %v741 = vadd.f32 %v559, %v740
  %v742 = vpop.f32.mrf.mxu0
  %v743 = vadd.f32 %v563, %v742
  %v744 = vpop.f32.mrf.mxu0
  %v745 = vadd.f32 %v559, %v744
  %v746 = vpop.f32.mrf.mxu0
  %v747 = vadd.f32 %v563, %v746
  %748 = vmatprep.mubr.bf16.mxu0 0
  %749 = vmatmul.mubr.bf16.gmra.mxu0 %v554
  %v750 = vpop.f32.mrf.mxu0
  %v751 = vadd.f32 %v559, %v750
  %v752 = vpop.f32.mrf.mxu0
  %v753 = vadd.f32 %v563, %v752
  %v754 = vpop.f32.mrf.mxu0
  %v755 = vadd.f32 %v559, %v754
  %v756 = vpop.f32.mrf.mxu0
  %v757 = vadd.f32 %v563, %v756
  %758 = vdwg.mxu0
  %v759 = vmul.f32 %v283, %v494
  %v760 = vmul.f32 %v286, %v494
  %v761 = vmul.f32 %v291, %v494
  %v762 = vmul.f32 %v294, %v494
  %v763 = vmul.f32 %v299, %v494
  %v764 = vmul.f32 %v302, %v494
  %v765 = vmul.f32 %v307, %v494
  %v766 = vmul.f32 %v310, %v494
  %v767 = vmul.f32 %v315, %v494
  %v768 = vmul.f32 %v318, %v494
  %v769 = vmul.f32 %v323, %v494
  %v770 = vmul.f32 %v326, %v494
  %v771 = vmul.f32 %v331, %v494
  %v772 = vmul.f32 %v334, %v494
  %v773 = vmul.f32 %v339, %v494
  %v774 = vmul.f32 %v342, %v494
  %v775 = vadd.f32 %v759, %v514
  %v776 = vadd.f32 %v760, %v514
  %v777 = vadd.f32 %v761, %v514
  %v778 = vadd.f32 %v762, %v514
  %v779 = vadd.f32 %v763, %v514
  %v780 = vadd.f32 %v764, %v514
  %v781 = vadd.f32 %v765, %v514
  %v782 = vadd.f32 %v766, %v514
  %v783 = vadd.f32 %v767, %v514
  %v784 = vadd.f32 %v768, %v514
  %v785 = vadd.f32 %v769, %v514
  %v786 = vadd.f32 %v770, %v514
  %v787 = vadd.f32 %v771, %v514
  %v788 = vadd.f32 %v772, %v514
  %v789 = vadd.f32 %v773, %v514
  %v790 = vadd.f32 %v774, %v514
  %v791 = vmax.f32 %v775, 0.0
  %v792 = vmax.f32 %v776, 0.0
  %v793 = vmax.f32 %v777, 0.0
  %v794 = vmax.f32 %v778, 0.0
  %v795 = vmax.f32 %v779, 0.0
  %v796 = vmax.f32 %v780, 0.0
  %v797 = vmax.f32 %v781, 0.0
  %v798 = vmax.f32 %v782, 0.0
  %v799 = vmax.f32 %v783, 0.0
  %v800 = vmax.f32 %v784, 0.0
  %v801 = vmax.f32 %v785, 0.0
  %v802 = vmax.f32 %v786, 0.0
  %v803 = vmax.f32 %v787, 0.0
  %v804 = vmax.f32 %v788, 0.0
  %v805 = vmax.f32 %v789, 0.0
  %v806 = vmax.f32 %v790, 0.0
  %v807 = vpack.c.bf16 %v792, %v791
  %v808 = vpack.c.bf16 %v794, %v793
  %v809 = vpack.c.bf16 %v796, %v795
  %v810 = vpack.c.bf16 %v798, %v797
  %v811 = vpack.c.bf16 %v800, %v799
  %v812 = vpack.c.bf16 %v802, %v801
  %v813 = vpack.c.bf16 %v804, %v803
  %v814 = vpack.c.bf16 %v806, %v805
  %815 = vmatprep.subr.bf16.mxu0 %v629
  %816 = vmatpush1.bf16.msra.mxu0 %v628
  %817 = vmatprep.subr.bf16.mxu0 %v627
  %818 = vmatpush1.bf16.msra.mxu0 %v626
  %819 = vmatprep.subr.bf16.mxu0 %v625
  %820 = vmatpush1.bf16.msra.mxu0 %v624
  %821 = vmatprep.subr.bf16.mxu0 %v623
  %822 = vmatpush1.bf16.msra.mxu0 %v622
  %823 = vmatprep.subr.bf16.mxu0 %v621
  %824 = vmatpush1.bf16.msra.mxu0 %v620
  %825 = vmatprep.subr.bf16.mxu0 %v619
  %826 = vmatpush1.bf16.msra.mxu0 %v618
  %827 = vmatprep.subr.bf16.mxu0 %v617
  %828 = vmatpush1.bf16.msra.mxu0 %v616
  %829 = vmatprep.subr.bf16.mxu0 %v615
  %830 = vmatpush1.bf16.msra.mxu0 %v614
  %831 = vmatprep.subr.bf16.mxu0 0
  %832 = vmatpush2.bf16.msra.mxu0 0
  %833 = vmatprep.subr.bf16.mxu0 0
  %834 = vmatpush2.bf16.msra.mxu0 0
  %835 = vmatprep.subr.bf16.mxu0 0
  %836 = vmatpush2.bf16.msra.mxu0 0
  %837 = vmatprep.subr.bf16.mxu0 0
  %838 = vmatpush2.bf16.msra.mxu0 0
  %839 = vmatprep.subr.bf16.mxu0 0
  %840 = vmatpush2.bf16.msra.mxu0 0
  %841 = vmatprep.subr.bf16.mxu0 0
  %842 = vmatpush2.bf16.msra.mxu0 0
  %843 = vmatprep.subr.bf16.mxu0 0
  %844 = vmatpush2.bf16.msra.mxu0 0
  %845 = vmatprep.subr.bf16.mxu0 0
  %846 = vmatpush2.bf16.msra.mxu0 0
  %847 = vmatprep.mubr.bf16.mxu0 0
  %848 = vmatmul.mubr.bf16.gmra.mxu0 %v807
  %v849 = vpop.f32.mrf.mxu0
  %v850 = vadd.f32 %v559, %v849
  %v851 = vpop.f32.mrf.mxu0
  %v852 = vadd.f32 %v563, %v851
  %v853 = vpop.f32.mrf.mxu0
  %v854 = vadd.f32 %v559, %v853
  %v855 = vpop.f32.mrf.mxu0
  %v856 = vadd.f32 %v563, %v855
  %857 = vmatprep.mubr.bf16.mxu0 0
  %858 = vmatmul.mubr.bf16.gmra.mxu0 %v808
  %v859 = vpop.f32.mrf.mxu0
  %v860 = vadd.f32 %v559, %v859
  %v861 = vpop.f32.mrf.mxu0
  %v862 = vadd.f32 %v563, %v861
  %v863 = vpop.f32.mrf.mxu0
  %v864 = vadd.f32 %v559, %v863
  %v865 = vpop.f32.mrf.mxu0
  %v866 = vadd.f32 %v563, %v865
  %867 = vmatprep.mubr.bf16.mxu0 0
  %868 = vmatmul.mubr.bf16.gmra.mxu0 %v809
  %v869 = vpop.f32.mrf.mxu0
  %v870 = vadd.f32 %v559, %v869
  %v871 = vpop.f32.mrf.mxu0
  %v872 = vadd.f32 %v563, %v871
  %v873 = vpop.f32.mrf.mxu0
  %v874 = vadd.f32 %v559, %v873
  %v875 = vpop.f32.mrf.mxu0
  %v876 = vadd.f32 %v563, %v875
  %877 = vmatprep.mubr.bf16.mxu0 0
  %878 = vmatmul.mubr.bf16.gmra.mxu0 %v810
  %v879 = vpop.f32.mrf.mxu0
  %v880 = vadd.f32 %v559, %v879
  %v881 = vpop.f32.mrf.mxu0
  %v882 = vadd.f32 %v563, %v881
  %v883 = vpop.f32.mrf.mxu0
  %v884 = vadd.f32 %v559, %v883
  %v885 = vpop.f32.mrf.mxu0
  %v886 = vadd.f32 %v563, %v885
  %887 = vmatprep.mubr.bf16.mxu0 0
  %888 = vmatmul.mubr.bf16.gmra.mxu0 %v811
  %v889 = vpop.f32.mrf.mxu0
  %v890 = vadd.f32 %v559, %v889
  %v891 = vpop.f32.mrf.mxu0
  %v892 = vadd.f32 %v563, %v891
  %v893 = vpop.f32.mrf.mxu0
  %v894 = vadd.f32 %v559, %v893
  %v895 = vpop.f32.mrf.mxu0
  %v896 = vadd.f32 %v563, %v895
  %897 = vmatprep.mubr.bf16.mxu0 0
  %898 = vmatmul.mubr.bf16.gmra.mxu0 %v812
  %v899 = vpop.f32.mrf.mxu0
  %v900 = vadd.f32 %v559, %v899
  %v901 = vpop.f32.mrf.mxu0
  %v902 = vadd.f32 %v563, %v901
  %v903 = vpop.f32.mrf.mxu0
  %v904 = vadd.f32 %v559, %v903
  %v905 = vpop.f32.mrf.mxu0
  %v906 = vadd.f32 %v563, %v905
  %907 = vmatprep.mubr.bf16.mxu0 0
  %908 = vmatmul.mubr.bf16.gmra.mxu0 %v813
  %v909 = vpop.f32.mrf.mxu0
  %v910 = vadd.f32 %v559, %v909
  %v911 = vpop.f32.mrf.mxu0
  %v912 = vadd.f32 %v563, %v911
  %v913 = vpop.f32.mrf.mxu0
  %v914 = vadd.f32 %v559, %v913
  %v915 = vpop.f32.mrf.mxu0
  %v916 = vadd.f32 %v563, %v915
  %917 = vmatprep.mubr.bf16.mxu0 0
  %918 = vmatmul.mubr.bf16.gmra.mxu0 %v814
  %v919 = vpop.f32.mrf.mxu0
  %v920 = vadd.f32 %v559, %v919
  %v921 = vpop.f32.mrf.mxu0
  %v922 = vadd.f32 %v563, %v921
  %v923 = vpop.f32.mrf.mxu0
  %v924 = vadd.f32 %v559, %v923
  %v925 = vpop.f32.mrf.mxu0
  %v926 = vadd.f32 %v563, %v925
  %927 = vdwg.mxu0
  %s928 = scalar_lea.vmem %s4, 1
  %v929 = vld [vmem:[%s928] ss:$4 sm:$0x3]
  %s930 = scalar_lea.vmem %s4, 2
  %v931 = vld [vmem:[%s930] ss:$4 sm:$0x3]
  %v932 = vadd.f32 %v681, %v685
  %v933 = vadd.f32 %v932, %v691
  %v934 = vadd.f32 %v933, %v695
  %v935 = vadd.f32 %v934, %v701
  %v936 = vadd.f32 %v935, %v705
  %v937 = vadd.f32 %v936, %v711
  %v938 = vadd.f32 %v937, %v715
  %v939 = vadd.f32 %v938, %v721
  %v940 = vadd.f32 %v939, %v725
  %v941 = vadd.f32 %v940, %v731
  %v942 = vadd.f32 %v941, %v735
  %v943 = vadd.f32 %v942, %v741
  %v944 = vadd.f32 %v943, %v745
  %v945 = vadd.f32 %v944, %v751
  %v946 = vadd.f32 %v945, %v755
  %v947 = vrot.slane %v946, 4
  %v948 = vadd.f32 %v946, %v947
  %v949 = vrot.slane %v948, 2
  %v950 = vadd.f32 %v948, %v949
  %v951 = vrot.slane %v950, 1
  %v952 = vadd.f32 %v950, %v951
  %v953 = vadd.f32 %v683, %v687
  %v954 = vadd.f32 %v953, %v693
  %v955 = vadd.f32 %v954, %v697
  %v956 = vadd.f32 %v955, %v703
  %v957 = vadd.f32 %v956, %v707
  %v958 = vadd.f32 %v957, %v713
  %v959 = vadd.f32 %v958, %v717
  %v960 = vadd.f32 %v959, %v723
  %v961 = vadd.f32 %v960, %v727
  %v962 = vadd.f32 %v961, %v733
  %v963 = vadd.f32 %v962, %v737
  %v964 = vadd.f32 %v963, %v743
  %v965 = vadd.f32 %v964, %v747
  %v966 = vadd.f32 %v965, %v753
  %v967 = vadd.f32 %v966, %v757
  %v968 = vrot.slane %v967, 4
  %v969 = vadd.f32 %v967, %v968
  %v970 = vrot.slane %v969, 2
  %v971 = vadd.f32 %v969, %v970
  %v972 = vrot.slane %v971, 1
  %v973 = vadd.f32 %v971, %v972
  %v974 = vmul.f32 %v681, %v681
  %v975 = vmul.f32 %v683, %v683
  %v976 = vmul.f32 %v685, %v685
  %v977 = vmul.f32 %v687, %v687
  %v978 = vmul.f32 %v691, %v691
  %v979 = vmul.f32 %v693, %v693
  %v980 = vmul.f32 %v695, %v695
  %v981 = vmul.f32 %v697, %v697
  %v982 = vmul.f32 %v701, %v701
  %v983 = vmul.f32 %v703, %v703
  %v984 = vmul.f32 %v705, %v705
  %v985 = vmul.f32 %v707, %v707
  %v986 = vmul.f32 %v711, %v711
  %v987 = vmul.f32 %v713, %v713
  %v988 = vmul.f32 %v715, %v715
  %v989 = vmul.f32 %v717, %v717
  %v990 = vmul.f32 %v721, %v721
  %v991 = vmul.f32 %v723, %v723
  %v992 = vmul.f32 %v725, %v725
  %v993 = vmul.f32 %v727, %v727
  %v994 = vmul.f32 %v731, %v731
  %v995 = vmul.f32 %v733, %v733
  %v996 = vmul.f32 %v735, %v735
  %v997 = vmul.f32 %v737, %v737
  %v998 = vmul.f32 %v741, %v741
  %v999 = vmul.f32 %v743, %v743
  %v1000 = vmul.f32 %v745, %v745
  %v1001 = vmul.f32 %v747, %v747
  %v1002 = vmul.f32 %v751, %v751
  %v1003 = vmul.f32 %v753, %v753
  %v1004 = vmul.f32 %v755, %v755
  %v1005 = vmul.f32 %v757, %v757
  %v1006 = vadd.f32 %v974, %v976
  %v1007 = vadd.f32 %v1006, %v978
  %v1008 = vadd.f32 %v1007, %v980
  %v1009 = vadd.f32 %v1008, %v982
  %v1010 = vadd.f32 %v1009, %v984
  %v1011 = vadd.f32 %v1010, %v986
  %v1012 = vadd.f32 %v1011, %v988
  %v1013 = vadd.f32 %v1012, %v990
  %v1014 = vadd.f32 %v1013, %v992
  %v1015 = vadd.f32 %v1014, %v994
  %v1016 = vadd.f32 %v1015, %v996
  %v1017 = vadd.f32 %v1016, %v998
  %v1018 = vadd.f32 %v1017, %v1000
  %v1019 = vadd.f32 %v1018, %v1002
  %v1020 = vadd.f32 %v1019, %v1004
  %v1021 = vrot.slane %v1020, 4
  %v1022 = vadd.f32 %v1020, %v1021
  %v1023 = vrot.slane %v1022, 2
  %v1024 = vadd.f32 %v1022, %v1023
  %v1025 = vrot.slane %v1024, 1
  %v1026 = vadd.f32 %v1024, %v1025
  %v1027 = vadd.f32 %v975, %v977
  %v1028 = vadd.f32 %v1027, %v979
  %v1029 = vadd.f32 %v1028, %v981
  %v1030 = vadd.f32 %v1029, %v983
  %v1031 = vadd.f32 %v1030, %v985
  %v1032 = vadd.f32 %v1031, %v987
  %v1033 = vadd.f32 %v1032, %v989
  %v1034 = vadd.f32 %v1033, %v991
  %v1035 = vadd.f32 %v1034, %v993
  %v1036 = vadd.f32 %v1035, %v995
  %v1037 = vadd.f32 %v1036, %v997
  %v1038 = vadd.f32 %v1037, %v999
  %v1039 = vadd.f32 %v1038, %v1001
  %v1040 = vadd.f32 %v1039, %v1003
  %v1041 = vadd.f32 %v1040, %v1005
  %v1042 = vrot.slane %v1041, 4
  %v1043 = vadd.f32 %v1041, %v1042
  %v1044 = vrot.slane %v1043, 2
  %v1045 = vadd.f32 %v1043, %v1044
  %v1046 = vrot.slane %v1045, 1
  %v1047 = vadd.f32 %v1045, %v1046
  %v1048 = vadd.f32 %v850, %v854
  %v1049 = vadd.f32 %v1048, %v860
  %v1050 = vadd.f32 %v1049, %v864
  %v1051 = vadd.f32 %v1050, %v870
  %v1052 = vadd.f32 %v1051, %v874
  %v1053 = vadd.f32 %v1052, %v880
  %v1054 = vadd.f32 %v1053, %v884
  %v1055 = vadd.f32 %v1054, %v890
  %v1056 = vadd.f32 %v1055, %v894
  %v1057 = vadd.f32 %v1056, %v900
  %v1058 = vadd.f32 %v1057, %v904
  %v1059 = vadd.f32 %v1058, %v910
  %v1060 = vadd.f32 %v1059, %v914
  %v1061 = vadd.f32 %v1060, %v920
  %v1062 = vadd.f32 %v1061, %v924
  %v1063 = vrot.slane %v1062, 4
  %v1064 = vadd.f32 %v1062, %v1063
  %v1065 = vrot.slane %v1064, 2
  %v1066 = vadd.f32 %v1064, %v1065
  %v1067 = vrot.slane %v1066, 1
  %v1068 = vadd.f32 %v1066, %v1067
  %v1069 = vadd.f32 %v852, %v856
  %v1070 = vadd.f32 %v1069, %v862
  %v1071 = vadd.f32 %v1070, %v866
  %v1072 = vadd.f32 %v1071, %v872
  %v1073 = vadd.f32 %v1072, %v876
  %v1074 = vadd.f32 %v1073, %v882
  %v1075 = vadd.f32 %v1074, %v886
  %v1076 = vadd.f32 %v1075, %v892
  %v1077 = vadd.f32 %v1076, %v896
  %v1078 = vadd.f32 %v1077, %v902
  %v1079 = vadd.f32 %v1078, %v906
  %v1080 = vadd.f32 %v1079, %v912
  %v1081 = vadd.f32 %v1080, %v916
  %v1082 = vadd.f32 %v1081, %v922
  %v1083 = vadd.f32 %v1082, %v926
  %v1084 = vrot.slane %v1083, 4
  %v1085 = vadd.f32 %v1083, %v1084
  %v1086 = vrot.slane %v1085, 2
  %v1087 = vadd.f32 %v1085, %v1086
  %v1088 = vrot.slane %v1087, 1
  %v1089 = vadd.f32 %v1087, %v1088
  %v1090 = vadd.f32 %v952, %v1068
  %v1091 = vadd.f32 %v973, %v1089
  %v1092 = vmul.f32 %v850, %v850
  %v1093 = vmul.f32 %v852, %v852
  %v1094 = vmul.f32 %v854, %v854
  %v1095 = vmul.f32 %v856, %v856
  %v1096 = vmul.f32 %v860, %v860
  %v1097 = vmul.f32 %v862, %v862
  %v1098 = vmul.f32 %v864, %v864
  %v1099 = vmul.f32 %v866, %v866
  %v1100 = vmul.f32 %v870, %v870
  %v1101 = vmul.f32 %v872, %v872
  %v1102 = vmul.f32 %v874, %v874
  %v1103 = vmul.f32 %v876, %v876
  %v1104 = vmul.f32 %v880, %v880
  %v1105 = vmul.f32 %v882, %v882
  %v1106 = vmul.f32 %v884, %v884
  %v1107 = vmul.f32 %v886, %v886
  %v1108 = vmul.f32 %v890, %v890
  %v1109 = vmul.f32 %v892, %v892
  %v1110 = vmul.f32 %v894, %v894
  %v1111 = vmul.f32 %v896, %v896
  %v1112 = vmul.f32 %v900, %v900
  %v1113 = vmul.f32 %v902, %v902
  %v1114 = vmul.f32 %v904, %v904
  %v1115 = vmul.f32 %v906, %v906
  %v1116 = vmul.f32 %v910, %v910
  %v1117 = vmul.f32 %v912, %v912
  %v1118 = vmul.f32 %v914, %v914
  %v1119 = vmul.f32 %v916, %v916
  %v1120 = vmul.f32 %v920, %v920
  %v1121 = vmul.f32 %v922, %v922
  %v1122 = vmul.f32 %v924, %v924
  %v1123 = vmul.f32 %v926, %v926
  %v1124 = vadd.f32 %v1092, %v1094
  %v1125 = vadd.f32 %v1124, %v1096
  %v1126 = vadd.f32 %v1125, %v1098
  %v1127 = vadd.f32 %v1126, %v1100
  %v1128 = vadd.f32 %v1127, %v1102
  %v1129 = vadd.f32 %v1128, %v1104
  %v1130 = vadd.f32 %v1129, %v1106
  %v1131 = vadd.f32 %v1130, %v1108
  %v1132 = vadd.f32 %v1131, %v1110
  %v1133 = vadd.f32 %v1132, %v1112
  %v1134 = vadd.f32 %v1133, %v1114
  %v1135 = vadd.f32 %v1134, %v1116
  %v1136 = vadd.f32 %v1135, %v1118
  %v1137 = vadd.f32 %v1136, %v1120
  %v1138 = vadd.f32 %v1137, %v1122
  %v1139 = vrot.slane %v1138, 4
  %v1140 = vadd.f32 %v1138, %v1139
  %v1141 = vrot.slane %v1140, 2
  %v1142 = vadd.f32 %v1140, %v1141
  %v1143 = vrot.slane %v1142, 1
  %v1144 = vadd.f32 %v1142, %v1143
  %v1145 = vadd.f32 %v1093, %v1095
  %v1146 = vadd.f32 %v1145, %v1097
  %v1147 = vadd.f32 %v1146, %v1099
  %v1148 = vadd.f32 %v1147, %v1101
  %v1149 = vadd.f32 %v1148, %v1103
  %v1150 = vadd.f32 %v1149, %v1105
  %v1151 = vadd.f32 %v1150, %v1107
  %v1152 = vadd.f32 %v1151, %v1109
  %v1153 = vadd.f32 %v1152, %v1111
  %v1154 = vadd.f32 %v1153, %v1113
  %v1155 = vadd.f32 %v1154, %v1115
  %v1156 = vadd.f32 %v1155, %v1117
  %v1157 = vadd.f32 %v1156, %v1119
  %v1158 = vadd.f32 %v1157, %v1121
  %v1159 = vadd.f32 %v1158, %v1123
  %v1160 = vrot.slane %v1159, 4
  %v1161 = vadd.f32 %v1159, %v1160
  %v1162 = vrot.slane %v1161, 2
  %v1163 = vadd.f32 %v1161, %v1162
  %v1164 = vrot.slane %v1163, 1
  %v1165 = vadd.f32 %v1163, %v1164
  %v1166 = vadd.f32 %v1026, %v1144
  %v1167 = vadd.f32 %v1047, %v1165
  %v1168 = vmul.f32 %v1090, 0.00390625
  %v1169 = vmul.f32 %v1091, 0.00390625
  %v1170 = vmul.f32 %v1166, 0.00390625
  %v1171 = vmul.f32 %v1167, 0.00390625
  %v1172 = vmul.f32 %v1168, %v1168
  %v1173 = vmul.f32 %v1169, %v1169
  %v1174 = vsub.f32 %v1170, %v1172
  %v1175 = vsub.f32 %v1171, %v1173
  %v1176 = vadd.f32 %v1174, 1e-05
  %v1177 = vadd.f32 %v1175, 1e-05
  %v1178 = vrsqrt.pop %v1176
  %v1179 = vrsqrt.pop %v1177
  %v1182 = vcombine.low %v1178, %v1179
  %v1184 = vunpack.c.l.s4 1966171168
  %v1185 = vunpack.c.0.s8 %v1184
  %v1186 = vlaneseq
  %v1187 = vshrl.u32 %v1186, 7
  %v1188 = vsub.s32 %v1185, %v1187
  %v1189 = vrot.slane %v1182, %v1188
  %v1191 = vunpack.c.l.s4 1966171168
  %v1192 = vunpack.c.0.s8 %v1191
  %v1193 = vlaneseq
  %v1194 = vshrl.u32 %v1193, 7
  %v1195 = vsub.s32 %v1192, %v1194
  %v1196 = vrot.slane %v1189, %v1195
  %v1198 = vmul.f32 %v929, %v1196
  %v1200 = vlaneseq
  %v1201 = vshrl.u32 %v1200, 7
  %v1202 = vsub.s32 0, %v1201
  %v1203 = vrot.slane %v1198, %v1202
  %v1204 = vlaneseq
  %v1205 = vshrl.u32 %v1204, 7
  %v1206 = vsub.s32 1, %v1205
  %v1207 = vrot.slane %v1198, %v1206
  %v1210 = vmul.f32 %v1168, %v1203
  %v1211 = vmul.f32 %v1169, %v1207
  %v1214 = vcombine.low %v1210, %v1211
  %v1216 = vunpack.c.l.s4 1966171168
  %v1217 = vunpack.c.0.s8 %v1216
  %v1218 = vlaneseq
  %v1219 = vshrl.u32 %v1218, 7
  %v1220 = vsub.s32 %v1217, %v1219
  %v1221 = vrot.slane %v1214, %v1220
  %v1223 = vunpack.c.l.s4 1966171168
  %v1224 = vunpack.c.0.s8 %v1223
  %v1225 = vlaneseq
  %v1226 = vshrl.u32 %v1225, 7
  %v1227 = vsub.s32 %v1224, %v1226
  %v1228 = vrot.slane %v1221, %v1227
  %v1230 = vsub.f32 %v931, %v1228
  %v1231 = vld [vmem:[%s6] sm:$0x1]
  %v1232 = vld [vmem:[%s5] sm:$0xf]
  %v1233 = vld [vmem:[%s5 + $0x4] sm:$0xf]
  %v1234 = vld [vmem:[%s5 + $0x8] sm:$0xf]
  %v1235 = vld [vmem:[%s5 + $0xc] sm:$0xf]
  %v1236 = vld [vmem:[%s5 + $0x10] sm:$0xf]
  %v1237 = vld [vmem:[%s5 + $0x14] sm:$0xf]
  %v1238 = vld [vmem:[%s5 + $0x18] sm:$0xf]
  %v1239 = vld [vmem:[%s5 + $0x1c] sm:$0xf]
  %v1240 = vld [vmem:[%s5 + $0x20] sm:$0xf]
  %v1241 = vld [vmem:[%s5 + $0x24] sm:$0xf]
  %v1242 = vld [vmem:[%s5 + $0x28] sm:$0xf]
  %v1243 = vld [vmem:[%s5 + $0x2c] sm:$0xf]
  %v1244 = vld [vmem:[%s5 + $0x30] sm:$0xf]
  %v1245 = vld [vmem:[%s5 + $0x34] sm:$0xf]
  %v1246 = vld [vmem:[%s5 + $0x38] sm:$0xf]
  %v1247 = vld [vmem:[%s5 + $0x3c] sm:$0xf]
  %v1248 = vld [vmem:[%s5 + $0x40] sm:$0xf]
  %v1249 = vld [vmem:[%s5 + $0x44] sm:$0xf]
  %v1250 = vld [vmem:[%s5 + $0x48] sm:$0xf]
  %v1251 = vld [vmem:[%s5 + $0x4c] sm:$0xf]
  %v1252 = vld [vmem:[%s5 + $0x50] sm:$0xf]
  %v1253 = vld [vmem:[%s5 + $0x54] sm:$0xf]
  %v1254 = vld [vmem:[%s5 + $0x58] sm:$0xf]
  %v1255 = vld [vmem:[%s5 + $0x5c] sm:$0xf]
  %v1256 = vld [vmem:[%s5 + $0x60] sm:$0xf]
  %v1257 = vld [vmem:[%s5 + $0x64] sm:$0xf]
  %v1258 = vld [vmem:[%s5 + $0x68] sm:$0xf]
  %v1259 = vld [vmem:[%s5 + $0x6c] sm:$0xf]
  %v1260 = vld [vmem:[%s5 + $0x70] sm:$0xf]
  %v1261 = vld [vmem:[%s5 + $0x74] sm:$0xf]
  %v1262 = vld [vmem:[%s5 + $0x78] sm:$0xf]
  %v1263 = vld [vmem:[%s5 + $0x7c] sm:$0xf]
  %v1264 = vmul.f32 %v681, %v1203
  %v1265 = vmul.f32 %v683, %v1207
  %v1266 = vmul.f32 %v685, %v1203
  %v1267 = vmul.f32 %v687, %v1207
  %v1268 = vmul.f32 %v691, %v1203
  %v1269 = vmul.f32 %v693, %v1207
  %v1270 = vmul.f32 %v695, %v1203
  %v1271 = vmul.f32 %v697, %v1207
  %v1272 = vmul.f32 %v701, %v1203
  %v1273 = vmul.f32 %v703, %v1207
  %v1274 = vmul.f32 %v705, %v1203
  %v1275 = vmul.f32 %v707, %v1207
  %v1276 = vmul.f32 %v711, %v1203
  %v1277 = vmul.f32 %v713, %v1207
  %v1278 = vmul.f32 %v715, %v1203
  %v1279 = vmul.f32 %v717, %v1207
  %v1280 = vmul.f32 %v721, %v1203
  %v1281 = vmul.f32 %v723, %v1207
  %v1282 = vmul.f32 %v725, %v1203
  %v1283 = vmul.f32 %v727, %v1207
  %v1284 = vmul.f32 %v731, %v1203
  %v1285 = vmul.f32 %v733, %v1207
  %v1286 = vmul.f32 %v735, %v1203
  %v1287 = vmul.f32 %v737, %v1207
  %v1288 = vmul.f32 %v741, %v1203
  %v1289 = vmul.f32 %v743, %v1207
  %v1290 = vmul.f32 %v745, %v1203
  %v1291 = vmul.f32 %v747, %v1207
  %v1292 = vmul.f32 %v751, %v1203
  %v1293 = vmul.f32 %v753, %v1207
  %v1294 = vmul.f32 %v755, %v1203
  %v1295 = vmul.f32 %v757, %v1207
  %v1297 = vlaneseq
  %v1298 = vshrl.u32 %v1297, 7
  %v1299 = vsub.s32 0, %v1298
  %v1300 = vrot.slane %v1230, %v1299
  %v1301 = vlaneseq
  %v1302 = vshrl.u32 %v1301, 7
  %v1303 = vsub.s32 1, %v1302
  %v1304 = vrot.slane %v1230, %v1303
  %v1307 = vadd.f32 %v1264, %v1300
  %v1308 = vadd.f32 %v1265, %v1304
  %v1309 = vadd.f32 %v1266, %v1300
  %v1310 = vadd.f32 %v1267, %v1304
  %v1311 = vadd.f32 %v1268, %v1300
  %v1312 = vadd.f32 %v1269, %v1304
  %v1313 = vadd.f32 %v1270, %v1300
  %v1314 = vadd.f32 %v1271, %v1304
  %v1315 = vadd.f32 %v1272, %v1300
  %v1316 = vadd.f32 %v1273, %v1304
  %v1317 = vadd.f32 %v1274, %v1300
  %v1318 = vadd.f32 %v1275, %v1304
  %v1319 = vadd.f32 %v1276, %v1300
  %v1320 = vadd.f32 %v1277, %v1304
  %v1321 = vadd.f32 %v1278, %v1300
  %v1322 = vadd.f32 %v1279, %v1304
  %v1323 = vadd.f32 %v1280, %v1300
  %v1324 = vadd.f32 %v1281, %v1304
  %v1325 = vadd.f32 %v1282, %v1300
  %v1326 = vadd.f32 %v1283, %v1304
  %v1327 = vadd.f32 %v1284, %v1300
  %v1328 = vadd.f32 %v1285, %v1304
  %v1329 = vadd.f32 %v1286, %v1300
  %v1330 = vadd.f32 %v1287, %v1304
  %v1331 = vadd.f32 %v1288, %v1300
  %v1332 = vadd.f32 %v1289, %v1304
  %v1333 = vadd.f32 %v1290, %v1300
  %v1334 = vadd.f32 %v1291, %v1304
  %v1335 = vadd.f32 %v1292, %v1300
  %v1336 = vadd.f32 %v1293, %v1304
  %v1337 = vadd.f32 %v1294, %v1300
  %v1338 = vadd.f32 %v1295, %v1304
  %v1339 = vmax.f32 %v1307, 0.0
  %v1340 = vmax.f32 %v1308, 0.0
  %v1341 = vmax.f32 %v1309, 0.0
  %v1342 = vmax.f32 %v1310, 0.0
  %v1343 = vmax.f32 %v1311, 0.0
  %v1344 = vmax.f32 %v1312, 0.0
  %v1345 = vmax.f32 %v1313, 0.0
  %v1346 = vmax.f32 %v1314, 0.0
  %v1347 = vmax.f32 %v1315, 0.0
  %v1348 = vmax.f32 %v1316, 0.0
  %v1349 = vmax.f32 %v1317, 0.0
  %v1350 = vmax.f32 %v1318, 0.0
  %v1351 = vmax.f32 %v1319, 0.0
  %v1352 = vmax.f32 %v1320, 0.0
  %v1353 = vmax.f32 %v1321, 0.0
  %v1354 = vmax.f32 %v1322, 0.0
  %v1355 = vmax.f32 %v1323, 0.0
  %v1356 = vmax.f32 %v1324, 0.0
  %v1357 = vmax.f32 %v1325, 0.0
  %v1358 = vmax.f32 %v1326, 0.0
  %v1359 = vmax.f32 %v1327, 0.0
  %v1360 = vmax.f32 %v1328, 0.0
  %v1361 = vmax.f32 %v1329, 0.0
  %v1362 = vmax.f32 %v1330, 0.0
  %v1363 = vmax.f32 %v1331, 0.0
  %v1364 = vmax.f32 %v1332, 0.0
  %v1365 = vmax.f32 %v1333, 0.0
  %v1366 = vmax.f32 %v1334, 0.0
  %v1367 = vmax.f32 %v1335, 0.0
  %v1368 = vmax.f32 %v1336, 0.0
  %v1369 = vmax.f32 %v1337, 0.0
  %v1370 = vmax.f32 %v1338, 0.0
  %v1371 = vpack.c.bf16 %v1341, %v1339
  %v1372 = vpack.c.bf16 %v1342, %v1340
  %v1373 = vpack.c.bf16 %v1345, %v1343
  %v1374 = vpack.c.bf16 %v1346, %v1344
  %v1375 = vpack.c.bf16 %v1349, %v1347
  %v1376 = vpack.c.bf16 %v1350, %v1348
  %v1377 = vpack.c.bf16 %v1353, %v1351
  %v1378 = vpack.c.bf16 %v1354, %v1352
  %v1379 = vpack.c.bf16 %v1357, %v1355
  %v1380 = vpack.c.bf16 %v1358, %v1356
  %v1381 = vpack.c.bf16 %v1361, %v1359
  %v1382 = vpack.c.bf16 %v1362, %v1360
  %v1383 = vpack.c.bf16 %v1365, %v1363
  %v1384 = vpack.c.bf16 %v1366, %v1364
  %v1385 = vpack.c.bf16 %v1369, %v1367
  %v1386 = vpack.c.bf16 %v1370, %v1368
  %v1387 = vlaneseq
  %v1388 = vshrl.u32 %v1387, 7
  %v1389 = vsub.s32 0, %v1388
  %v1390 = vrot.slane %v1231, %v1389
  %v1423 = vunpack.c.l.b16 %v1232
  %v1424 = vunpack.c.l.b16 %v1233
  %v1425 = vunpack.c.l.b16 %v1234
  %v1426 = vunpack.c.l.b16 %v1235
  %v1427 = vunpack.c.l.b16 %v1236
  %v1428 = vunpack.c.l.b16 %v1237
  %v1429 = vunpack.c.l.b16 %v1238
  %v1430 = vunpack.c.l.b16 %v1239
  %v1431 = vunpack.c.l.b16 %v1240
  %v1432 = vunpack.c.l.b16 %v1241
  %v1433 = vunpack.c.l.b16 %v1242
  %v1434 = vunpack.c.l.b16 %v1243
  %v1435 = vunpack.c.l.b16 %v1244
  %v1436 = vunpack.c.l.b16 %v1245
  %v1437 = vunpack.c.l.b16 %v1246
  %v1438 = vunpack.c.l.b16 %v1247
  %v1439 = vunpack.c.l.b16 %v1248
  %v1440 = vunpack.c.l.b16 %v1249
  %v1441 = vunpack.c.l.b16 %v1250
  %v1442 = vunpack.c.l.b16 %v1251
  %v1443 = vunpack.c.l.b16 %v1252
  %v1444 = vunpack.c.l.b16 %v1253
  %v1445 = vunpack.c.l.b16 %v1254
  %v1446 = vunpack.c.l.b16 %v1255
  %v1447 = vunpack.c.l.b16 %v1256
  %v1448 = vunpack.c.l.b16 %v1257
  %v1449 = vunpack.c.l.b16 %v1258
  %v1450 = vunpack.c.l.b16 %v1259
  %v1451 = vunpack.c.l.b16 %v1260
  %v1452 = vunpack.c.l.b16 %v1261
  %v1453 = vunpack.c.l.b16 %v1262
  %v1454 = vunpack.c.l.b16 %v1263
  %v1455 = vpack.c.b16 %v1424, %v1423
  %v1456 = vpack.c.b16 %v1426, %v1425
  %v1457 = vpack.c.b16 %v1428, %v1427
  %v1458 = vpack.c.b16 %v1430, %v1429
  %v1459 = vpack.c.b16 %v1432, %v1431
  %v1460 = vpack.c.b16 %v1434, %v1433
  %v1461 = vpack.c.b16 %v1436, %v1435
  %v1462 = vpack.c.b16 %v1438, %v1437
  %v1463 = vpack.c.b16 %v1440, %v1439
  %v1464 = vpack.c.b16 %v1442, %v1441
  %v1465 = vpack.c.b16 %v1444, %v1443
  %v1466 = vpack.c.b16 %v1446, %v1445
  %v1467 = vpack.c.b16 %v1448, %v1447
  %v1468 = vpack.c.b16 %v1450, %v1449
  %v1469 = vpack.c.b16 %v1452, %v1451
  %v1470 = vpack.c.b16 %v1454, %v1453
  %1487 = vmatprep.subr.bf16.mxu0 0
  %1488 = vmatpush1.bf16.msra.mxu0 %v1462
  %1489 = vmatprep.subr.bf16.mxu0 0
  %1490 = vmatpush1.bf16.msra.mxu0 %v1461
  %1491 = vmatprep.subr.bf16.mxu0 0
  %1492 = vmatpush1.bf16.msra.mxu0 %v1460
  %1493 = vmatprep.subr.bf16.mxu0 0
  %1494 = vmatpush1.bf16.msra.mxu0 %v1459
  %1495 = vmatprep.subr.bf16.mxu0 0
  %1496 = vmatpush1.bf16.msra.mxu0 %v1458
  %1497 = vmatprep.subr.bf16.mxu0 0
  %1498 = vmatpush1.bf16.msra.mxu0 %v1457
  %1499 = vmatprep.subr.bf16.mxu0 0
  %1500 = vmatpush1.bf16.msra.mxu0 %v1456
  %1501 = vmatprep.subr.bf16.mxu0 0
  %1502 = vmatpush1.bf16.msra.mxu0 %v1455
  %1503 = vmatprep.subr.bf16.mxu0 0
  %1504 = vmatpush2.bf16.msra.mxu0 %v1470
  %1505 = vmatprep.subr.bf16.mxu0 0
  %1506 = vmatpush2.bf16.msra.mxu0 %v1469
  %1507 = vmatprep.subr.bf16.mxu0 0
  %1508 = vmatpush2.bf16.msra.mxu0 %v1468
  %1509 = vmatprep.subr.bf16.mxu0 0
  %1510 = vmatpush2.bf16.msra.mxu0 %v1467
  %1511 = vmatprep.subr.bf16.mxu0 0
  %1512 = vmatpush2.bf16.msra.mxu0 %v1466
  %1513 = vmatprep.subr.bf16.mxu0 0
  %1514 = vmatpush2.bf16.msra.mxu0 %v1465
  %1515 = vmatprep.subr.bf16.mxu0 0
  %1516 = vmatpush2.bf16.msra.mxu0 %v1464
  %1517 = vmatprep.subr.bf16.mxu0 0
  %1518 = vmatpush2.bf16.msra.mxu0 %v1463
  %1519 = vmatprep.mubr.bf16.mxu0 %v1372
  %1520 = vmatmul.mubr.bf16.gmra.mxu0 %v1371
  %v1521 = vpop.f32.mrf.mxu0
  %v1522 = vadd.f32 %v1390, %v1521
  %v1523 = vpop.f32.mrf.mxu0
  %v1524 = vpop.f32.mrf.mxu0
  %v1525 = vadd.f32 %v1390, %v1524
  %v1526 = vpop.f32.mrf.mxu0
  %1527 = vmatprep.mubr.bf16.mxu0 %v1374
  %1528 = vmatmul.mubr.bf16.gmra.mxu0 %v1373
  %v1529 = vpop.f32.mrf.mxu0
  %v1530 = vadd.f32 %v1390, %v1529
  %v1531 = vpop.f32.mrf.mxu0
  %v1532 = vpop.f32.mrf.mxu0
  %v1533 = vadd.f32 %v1390, %v1532
  %v1534 = vpop.f32.mrf.mxu0
  %1535 = vmatprep.mubr.bf16.mxu0 %v1376
  %1536 = vmatmul.mubr.bf16.gmra.mxu0 %v1375
  %v1537 = vpop.f32.mrf.mxu0
  %v1538 = vadd.f32 %v1390, %v1537
  %v1539 = vpop.f32.mrf.mxu0
  %v1540 = vpop.f32.mrf.mxu0
  %v1541 = vadd.f32 %v1390, %v1540
  %v1542 = vpop.f32.mrf.mxu0
  %1543 = vmatprep.mubr.bf16.mxu0 %v1378
  %1544 = vmatmul.mubr.bf16.gmra.mxu0 %v1377
  %v1545 = vpop.f32.mrf.mxu0
  %v1546 = vadd.f32 %v1390, %v1545
  %v1547 = vpop.f32.mrf.mxu0
  %v1548 = vpop.f32.mrf.mxu0
  %v1549 = vadd.f32 %v1390, %v1548
  %v1550 = vpop.f32.mrf.mxu0
  %1551 = vmatprep.mubr.bf16.mxu0 %v1380
  %1552 = vmatmul.mubr.bf16.gmra.mxu0 %v1379
  %v1553 = vpop.f32.mrf.mxu0
  %v1554 = vadd.f32 %v1390, %v1553
  %v1555 = vpop.f32.mrf.mxu0
  %v1556 = vpop.f32.mrf.mxu0
  %v1557 = vadd.f32 %v1390, %v1556
  %v1558 = vpop.f32.mrf.mxu0
  %1559 = vmatprep.mubr.bf16.mxu0 %v1382
  %1560 = vmatmul.mubr.bf16.gmra.mxu0 %v1381
  %v1561 = vpop.f32.mrf.mxu0
  %v1562 = vadd.f32 %v1390, %v1561
  %v1563 = vpop.f32.mrf.mxu0
  %v1564 = vpop.f32.mrf.mxu0
  %v1565 = vadd.f32 %v1390, %v1564
  %v1566 = vpop.f32.mrf.mxu0
  %1567 = vmatprep.mubr.bf16.mxu0 %v1384
  %1568 = vmatmul.mubr.bf16.gmra.mxu0 %v1383
  %v1569 = vpop.f32.mrf.mxu0
  %v1570 = vadd.f32 %v1390, %v1569
  %v1571 = vpop.f32.mrf.mxu0
  %v1572 = vpop.f32.mrf.mxu0
  %v1573 = vadd.f32 %v1390, %v1572
  %v1574 = vpop.f32.mrf.mxu0
  %1575 = vmatprep.mubr.bf16.mxu0 %v1386
  %1576 = vmatmul.mubr.bf16.gmra.mxu0 %v1385
  %v1577 = vpop.f32.mrf.mxu0
  %v1578 = vadd.f32 %v1390, %v1577
  %v1579 = vpop.f32.mrf.mxu0
  %v1580 = vpop.f32.mrf.mxu0
  %v1581 = vadd.f32 %v1390, %v1580
  %v1582 = vpop.f32.mrf.mxu0
  %1583 = vdwg.mxu0
  %v1584 = vmul.f32 %v850, %v1203
  %v1585 = vmul.f32 %v852, %v1207
  %v1586 = vmul.f32 %v854, %v1203
  %v1587 = vmul.f32 %v856, %v1207
  %v1588 = vmul.f32 %v860, %v1203
  %v1589 = vmul.f32 %v862, %v1207
  %v1590 = vmul.f32 %v864, %v1203
  %v1591 = vmul.f32 %v866, %v1207
  %v1592 = vmul.f32 %v870, %v1203
  %v1593 = vmul.f32 %v872, %v1207
  %v1594 = vmul.f32 %v874, %v1203
  %v1595 = vmul.f32 %v876, %v1207
  %v1596 = vmul.f32 %v880, %v1203
  %v1597 = vmul.f32 %v882, %v1207
  %v1598 = vmul.f32 %v884, %v1203
  %v1599 = vmul.f32 %v886, %v1207
  %v1600 = vmul.f32 %v890, %v1203
  %v1601 = vmul.f32 %v892, %v1207
  %v1602 = vmul.f32 %v894, %v1203
  %v1603 = vmul.f32 %v896, %v1207
  %v1604 = vmul.f32 %v900, %v1203
  %v1605 = vmul.f32 %v902, %v1207
  %v1606 = vmul.f32 %v904, %v1203
  %v1607 = vmul.f32 %v906, %v1207
  %v1608 = vmul.f32 %v910, %v1203
  %v1609 = vmul.f32 %v912, %v1207
  %v1610 = vmul.f32 %v914, %v1203
  %v1611 = vmul.f32 %v916, %v1207
  %v1612 = vmul.f32 %v920, %v1203
  %v1613 = vmul.f32 %v922, %v1207
  %v1614 = vmul.f32 %v924, %v1203
  %v1615 = vmul.f32 %v926, %v1207
  %v1616 = vadd.f32 %v1584, %v1300
  %v1617 = vadd.f32 %v1585, %v1304
  %v1618 = vadd.f32 %v1586, %v1300
  %v1619 = vadd.f32 %v1587, %v1304
  %v1620 = vadd.f32 %v1588, %v1300
  %v1621 = vadd.f32 %v1589, %v1304
  %v1622 = vadd.f32 %v1590, %v1300
  %v1623 = vadd.f32 %v1591, %v1304
  %v1624 = vadd.f32 %v1592, %v1300
  %v1625 = vadd.f32 %v1593, %v1304
  %v1626 = vadd.f32 %v1594, %v1300
  %v1627 = vadd.f32 %v1595, %v1304
  %v1628 = vadd.f32 %v1596, %v1300
  %v1629 = vadd.f32 %v1597, %v1304
  %v1630 = vadd.f32 %v1598, %v1300
  %v1631 = vadd.f32 %v1599, %v1304
  %v1632 = vadd.f32 %v1600, %v1300
  %v1633 = vadd.f32 %v1601, %v1304
  %v1634 = vadd.f32 %v1602, %v1300
  %v1635 = vadd.f32 %v1603, %v1304
  %v1636 = vadd.f32 %v1604, %v1300
  %v1637 = vadd.f32 %v1605, %v1304
  %v1638 = vadd.f32 %v1606, %v1300
  %v1639 = vadd.f32 %v1607, %v1304
  %v1640 = vadd.f32 %v1608, %v1300
  %v1641 = vadd.f32 %v1609, %v1304
  %v1642 = vadd.f32 %v1610, %v1300
  %v1643 = vadd.f32 %v1611, %v1304
  %v1644 = vadd.f32 %v1612, %v1300
  %v1645 = vadd.f32 %v1613, %v1304
  %v1646 = vadd.f32 %v1614, %v1300
  %v1647 = vadd.f32 %v1615, %v1304
  %v1648 = vmax.f32 %v1616, 0.0
  %v1649 = vmax.f32 %v1617, 0.0
  %v1650 = vmax.f32 %v1618, 0.0
  %v1651 = vmax.f32 %v1619, 0.0
  %v1652 = vmax.f32 %v1620, 0.0
  %v1653 = vmax.f32 %v1621, 0.0
  %v1654 = vmax.f32 %v1622, 0.0
  %v1655 = vmax.f32 %v1623, 0.0
  %v1656 = vmax.f32 %v1624, 0.0
  %v1657 = vmax.f32 %v1625, 0.0
  %v1658 = vmax.f32 %v1626, 0.0
  %v1659 = vmax.f32 %v1627, 0.0
  %v1660 = vmax.f32 %v1628, 0.0
  %v1661 = vmax.f32 %v1629, 0.0
  %v1662 = vmax.f32 %v1630, 0.0
  %v1663 = vmax.f32 %v1631, 0.0
  %v1664 = vmax.f32 %v1632, 0.0
  %v1665 = vmax.f32 %v1633, 0.0
  %v1666 = vmax.f32 %v1634, 0.0
  %v1667 = vmax.f32 %v1635, 0.0
  %v1668 = vmax.f32 %v1636, 0.0
  %v1669 = vmax.f32 %v1637, 0.0
  %v1670 = vmax.f32 %v1638, 0.0
  %v1671 = vmax.f32 %v1639, 0.0
  %v1672 = vmax.f32 %v1640, 0.0
  %v1673 = vmax.f32 %v1641, 0.0
  %v1674 = vmax.f32 %v1642, 0.0
  %v1675 = vmax.f32 %v1643, 0.0
  %v1676 = vmax.f32 %v1644, 0.0
  %v1677 = vmax.f32 %v1645, 0.0
  %v1678 = vmax.f32 %v1646, 0.0
  %v1679 = vmax.f32 %v1647, 0.0
  %v1680 = vpack.c.bf16 %v1650, %v1648
  %v1681 = vpack.c.bf16 %v1651, %v1649
  %v1682 = vpack.c.bf16 %v1654, %v1652
  %v1683 = vpack.c.bf16 %v1655, %v1653
  %v1684 = vpack.c.bf16 %v1658, %v1656
  %v1685 = vpack.c.bf16 %v1659, %v1657
  %v1686 = vpack.c.bf16 %v1662, %v1660
  %v1687 = vpack.c.bf16 %v1663, %v1661
  %v1688 = vpack.c.bf16 %v1666, %v1664
  %v1689 = vpack.c.bf16 %v1667, %v1665
  %v1690 = vpack.c.bf16 %v1670, %v1668
  %v1691 = vpack.c.bf16 %v1671, %v1669
  %v1692 = vpack.c.bf16 %v1674, %v1672
  %v1693 = vpack.c.bf16 %v1675, %v1673
  %v1694 = vpack.c.bf16 %v1678, %v1676
  %v1695 = vpack.c.bf16 %v1679, %v1677
  %1696 = vmatprep.subr.bf16.mxu0 0
  %1697 = vmatpush1.bf16.msra.mxu0 %v1462
  %1698 = vmatprep.subr.bf16.mxu0 0
  %1699 = vmatpush1.bf16.msra.mxu0 %v1461
  %1700 = vmatprep.subr.bf16.mxu0 0
  %1701 = vmatpush1.bf16.msra.mxu0 %v1460
  %1702 = vmatprep.subr.bf16.mxu0 0
  %1703 = vmatpush1.bf16.msra.mxu0 %v1459
  %1704 = vmatprep.subr.bf16.mxu0 0
  %1705 = vmatpush1.bf16.msra.mxu0 %v1458
  %1706 = vmatprep.subr.bf16.mxu0 0
  %1707 = vmatpush1.bf16.msra.mxu0 %v1457
  %1708 = vmatprep.subr.bf16.mxu0 0
  %1709 = vmatpush1.bf16.msra.mxu0 %v1456
  %1710 = vmatprep.subr.bf16.mxu0 0
  %1711 = vmatpush1.bf16.msra.mxu0 %v1455
  %1712 = vmatprep.subr.bf16.mxu0 0
  %1713 = vmatpush2.bf16.msra.mxu0 %v1470
  %1714 = vmatprep.subr.bf16.mxu0 0
  %1715 = vmatpush2.bf16.msra.mxu0 %v1469
  %1716 = vmatprep.subr.bf16.mxu0 0
  %1717 = vmatpush2.bf16.msra.mxu0 %v1468
  %1718 = vmatprep.subr.bf16.mxu0 0
  %1719 = vmatpush2.bf16.msra.mxu0 %v1467
  %1720 = vmatprep.subr.bf16.mxu0 0
  %1721 = vmatpush2.bf16.msra.mxu0 %v1466
  %1722 = vmatprep.subr.bf16.mxu0 0
  %1723 = vmatpush2.bf16.msra.mxu0 %v1465
  %1724 = vmatprep.subr.bf16.mxu0 0
  %1725 = vmatpush2.bf16.msra.mxu0 %v1464
  %1726 = vmatprep.subr.bf16.mxu0 0
  %1727 = vmatpush2.bf16.msra.mxu0 %v1463
  %1728 = vmatprep.mubr.bf16.mxu0 %v1681
  %1729 = vmatmul.mubr.bf16.gmra.mxu0 %v1680
  %v1730 = vpop.f32.mrf.mxu0
  %v1731 = vadd.f32 %v1390, %v1730
  %v1732 = vpop.f32.mrf.mxu0
  %v1733 = vpop.f32.mrf.mxu0
  %v1734 = vadd.f32 %v1390, %v1733
  %v1735 = vpop.f32.mrf.mxu0
  %1736 = vmatprep.mubr.bf16.mxu0 %v1683
  %1737 = vmatmul.mubr.bf16.gmra.mxu0 %v1682
  %v1738 = vpop.f32.mrf.mxu0
  %v1739 = vadd.f32 %v1390, %v1738
  %v1740 = vpop.f32.mrf.mxu0
  %v1741 = vpop.f32.mrf.mxu0
  %v1742 = vadd.f32 %v1390, %v1741
  %v1743 = vpop.f32.mrf.mxu0
  %1744 = vmatprep.mubr.bf16.mxu0 %v1685
  %1745 = vmatmul.mubr.bf16.gmra.mxu0 %v1684
  %v1746 = vpop.f32.mrf.mxu0
  %v1747 = vadd.f32 %v1390, %v1746
  %v1748 = vpop.f32.mrf.mxu0
  %v1749 = vpop.f32.mrf.mxu0
  %v1750 = vadd.f32 %v1390, %v1749
  %v1751 = vpop.f32.mrf.mxu0
  %1752 = vmatprep.mubr.bf16.mxu0 %v1687
  %1753 = vmatmul.mubr.bf16.gmra.mxu0 %v1686
  %v1754 = vpop.f32.mrf.mxu0
  %v1755 = vadd.f32 %v1390, %v1754
  %v1756 = vpop.f32.mrf.mxu0
  %v1757 = vpop.f32.mrf.mxu0
  %v1758 = vadd.f32 %v1390, %v1757
  %v1759 = vpop.f32.mrf.mxu0
  %1760 = vmatprep.mubr.bf16.mxu0 %v1689
  %1761 = vmatmul.mubr.bf16.gmra.mxu0 %v1688
  %v1762 = vpop.f32.mrf.mxu0
  %v1763 = vadd.f32 %v1390, %v1762
  %v1764 = vpop.f32.mrf.mxu0
  %v1765 = vpop.f32.mrf.mxu0
  %v1766 = vadd.f32 %v1390, %v1765
  %v1767 = vpop.f32.mrf.mxu0
  %1768 = vmatprep.mubr.bf16.mxu0 %v1691
  %1769 = vmatmul.mubr.bf16.gmra.mxu0 %v1690
  %v1770 = vpop.f32.mrf.mxu0
  %v1771 = vadd.f32 %v1390, %v1770
  %v1772 = vpop.f32.mrf.mxu0
  %v1773 = vpop.f32.mrf.mxu0
  %v1774 = vadd.f32 %v1390, %v1773
  %v1775 = vpop.f32.mrf.mxu0
  %1776 = vmatprep.mubr.bf16.mxu0 %v1693
  %1777 = vmatmul.mubr.bf16.gmra.mxu0 %v1692
  %v1778 = vpop.f32.mrf.mxu0
  %v1779 = vadd.f32 %v1390, %v1778
  %v1780 = vpop.f32.mrf.mxu0
  %v1781 = vpop.f32.mrf.mxu0
  %v1782 = vadd.f32 %v1390, %v1781
  %v1783 = vpop.f32.mrf.mxu0
  %1784 = vmatprep.mubr.bf16.mxu0 %v1695
  %1785 = vmatmul.mubr.bf16.gmra.mxu0 %v1694
  %v1786 = vpop.f32.mrf.mxu0
  %v1787 = vadd.f32 %v1390, %v1786
  %v1788 = vpop.f32.mrf.mxu0
  %v1789 = vpop.f32.mrf.mxu0
  %v1790 = vadd.f32 %v1390, %v1789
  %v1791 = vpop.f32.mrf.mxu0
  %1792 = vdwg.mxu0
  %v1793 = vld [vmem:[%s6 + $0x1] sm:$0x1]
  %v1794 = vld [vmem:[%s6 + $0x2] sm:$0x1]
  %v1795 = vadd.f32 %v1522, %v1525
  %v1796 = vadd.f32 %v1795, %v1530
  %v1797 = vadd.f32 %v1796, %v1533
  %v1798 = vadd.f32 %v1797, %v1538
  %v1799 = vadd.f32 %v1798, %v1541
  %v1800 = vadd.f32 %v1799, %v1546
  %v1801 = vadd.f32 %v1800, %v1549
  %v1802 = vadd.f32 %v1801, %v1554
  %v1803 = vadd.f32 %v1802, %v1557
  %v1804 = vadd.f32 %v1803, %v1562
  %v1805 = vadd.f32 %v1804, %v1565
  %v1806 = vadd.f32 %v1805, %v1570
  %v1807 = vadd.f32 %v1806, %v1573
  %v1808 = vadd.f32 %v1807, %v1578
  %v1809 = vadd.f32 %v1808, %v1581
  %v1810 = vrot.slane %v1809, 4
  %v1811 = vadd.f32 %v1809, %v1810
  %v1812 = vrot.slane %v1811, 2
  %v1813 = vadd.f32 %v1811, %v1812
  %v1814 = vrot.slane %v1813, 1
  %v1815 = vadd.f32 %v1813, %v1814
  %v1816 = vmul.f32 %v1522, %v1522
  %v1817 = vmul.f32 %v1525, %v1525
  %v1818 = vmul.f32 %v1530, %v1530
  %v1819 = vmul.f32 %v1533, %v1533
  %v1820 = vmul.f32 %v1538, %v1538
  %v1821 = vmul.f32 %v1541, %v1541
  %v1822 = vmul.f32 %v1546, %v1546
  %v1823 = vmul.f32 %v1549, %v1549
  %v1824 = vmul.f32 %v1554, %v1554
  %v1825 = vmul.f32 %v1557, %v1557
  %v1826 = vmul.f32 %v1562, %v1562
  %v1827 = vmul.f32 %v1565, %v1565
  %v1828 = vmul.f32 %v1570, %v1570
  %v1829 = vmul.f32 %v1573, %v1573
  %v1830 = vmul.f32 %v1578, %v1578
  %v1831 = vmul.f32 %v1581, %v1581
  %v1832 = vadd.f32 %v1816, %v1817
  %v1833 = vadd.f32 %v1832, %v1818
  %v1834 = vadd.f32 %v1833, %v1819
  %v1835 = vadd.f32 %v1834, %v1820
  %v1836 = vadd.f32 %v1835, %v1821
  %v1837 = vadd.f32 %v1836, %v1822
  %v1838 = vadd.f32 %v1837, %v1823
  %v1839 = vadd.f32 %v1838, %v1824
  %v1840 = vadd.f32 %v1839, %v1825
  %v1841 = vadd.f32 %v1840, %v1826
  %v1842 = vadd.f32 %v1841, %v1827
  %v1843 = vadd.f32 %v1842, %v1828
  %v1844 = vadd.f32 %v1843, %v1829
  %v1845 = vadd.f32 %v1844, %v1830
  %v1846 = vadd.f32 %v1845, %v1831
  %v1847 = vrot.slane %v1846, 4
  %v1848 = vadd.f32 %v1846, %v1847
  %v1849 = vrot.slane %v1848, 2
  %v1850 = vadd.f32 %v1848, %v1849
  %v1851 = vrot.slane %v1850, 1
  %v1852 = vadd.f32 %v1850, %v1851
  %v1853 = vadd.f32 %v1731, %v1734
  %v1854 = vadd.f32 %v1853, %v1739
  %v1855 = vadd.f32 %v1854, %v1742
  %v1856 = vadd.f32 %v1855, %v1747
  %v1857 = vadd.f32 %v1856, %v1750
  %v1858 = vadd.f32 %v1857, %v1755
  %v1859 = vadd.f32 %v1858, %v1758
  %v1860 = vadd.f32 %v1859, %v1763
  %v1861 = vadd.f32 %v1860, %v1766
  %v1862 = vadd.f32 %v1861, %v1771
  %v1863 = vadd.f32 %v1862, %v1774
  %v1864 = vadd.f32 %v1863, %v1779
  %v1865 = vadd.f32 %v1864, %v1782
  %v1866 = vadd.f32 %v1865, %v1787
  %v1867 = vadd.f32 %v1866, %v1790
  %v1868 = vrot.slane %v1867, 4
  %v1869 = vadd.f32 %v1867, %v1868
  %v1870 = vrot.slane %v1869, 2
  %v1871 = vadd.f32 %v1869, %v1870
  %v1872 = vrot.slane %v1871, 1
  %v1873 = vadd.f32 %v1871, %v1872
  %v1874 = vadd.f32 %v1815, %v1873
  %v1875 = vmul.f32 %v1731, %v1731
  %v1876 = vmul.f32 %v1734, %v1734
  %v1877 = vmul.f32 %v1739, %v1739
  %v1878 = vmul.f32 %v1742, %v1742
  %v1879 = vmul.f32 %v1747, %v1747
  %v1880 = vmul.f32 %v1750, %v1750
  %v1881 = vmul.f32 %v1755, %v1755
  %v1882 = vmul.f32 %v1758, %v1758
  %v1883 = vmul.f32 %v1763, %v1763
  %v1884 = vmul.f32 %v1766, %v1766
  %v1885 = vmul.f32 %v1771, %v1771
  %v1886 = vmul.f32 %v1774, %v1774
  %v1887 = vmul.f32 %v1779, %v1779
  %v1888 = vmul.f32 %v1782, %v1782
  %v1889 = vmul.f32 %v1787, %v1787
  %v1890 = vmul.f32 %v1790, %v1790
  %v1891 = vadd.f32 %v1875, %v1876
  %v1892 = vadd.f32 %v1891, %v1877
  %v1893 = vadd.f32 %v1892, %v1878
  %v1894 = vadd.f32 %v1893, %v1879
  %v1895 = vadd.f32 %v1894, %v1880
  %v1896 = vadd.f32 %v1895, %v1881
  %v1897 = vadd.f32 %v1896, %v1882
  %v1898 = vadd.f32 %v1897, %v1883
  %v1899 = vadd.f32 %v1898, %v1884
  %v1900 = vadd.f32 %v1899, %v1885
  %v1901 = vadd.f32 %v1900, %v1886
  %v1902 = vadd.f32 %v1901, %v1887
  %v1903 = vadd.f32 %v1902, %v1888
  %v1904 = vadd.f32 %v1903, %v1889
  %v1905 = vadd.f32 %v1904, %v1890
  %v1906 = vrot.slane %v1905, 4
  %v1907 = vadd.f32 %v1905, %v1906
  %v1908 = vrot.slane %v1907, 2
  %v1909 = vadd.f32 %v1907, %v1908
  %v1910 = vrot.slane %v1909, 1
  %v1911 = vadd.f32 %v1909, %v1910
  %v1912 = vadd.f32 %v1852, %v1911
  %v1913 = vmul.f32 %v1874, 0.00390625
  %v1914 = vmul.f32 %v1912, 0.00390625
  %v1915 = vmul.f32 %v1913, %v1913
  %v1916 = vsub.f32 %v1914, %v1915
  %v1917 = vadd.f32 %v1916, 1e-05
  %v1918 = vrsqrt.pop %v1917
  %v1919 = vmul.f32 %v1793, %v1918
  %v1920 = vmul.f32 %v1913, %v1919
  %v1921 = vsub.f32 %v1794, %v1920
  %v1922 = vld [vmem:[%s7] sm:$0xf]
  %v1923 = vld [vmem:[%s7 + $0x4] sm:$0xf]
  %v1924 = vld [vmem:[%s7 + $0x8] sm:$0xf]
  %v1925 = vld [vmem:[%s7 + $0xc] sm:$0xf]
  %v1926 = vld [vmem:[%s7 + $0x10] sm:$0xf]
  %v1927 = vld [vmem:[%s7 + $0x14] sm:$0xf]
  %v1928 = vld [vmem:[%s7 + $0x18] sm:$0xf]
  %v1929 = vld [vmem:[%s7 + $0x1c] sm:$0xf]
  %v1930 = vld [vmem:[%s7 + $0x20] sm:$0xf]
  %v1931 = vld [vmem:[%s7 + $0x24] sm:$0xf]
  %v1932 = vld [vmem:[%s7 + $0x28] sm:$0xf]
  %v1933 = vld [vmem:[%s7 + $0x2c] sm:$0xf]
  %v1934 = vld [vmem:[%s7 + $0x30] sm:$0xf]
  %v1935 = vld [vmem:[%s7 + $0x34] sm:$0xf]
  %v1936 = vld [vmem:[%s7 + $0x38] sm:$0xf]
  %v1937 = vld [vmem:[%s7 + $0x3c] sm:$0xf]
  %v1938 = vld [vmem:[%s8] sm:$0x1]
  %v1939 = vlaneseq
  %v1940 = vshrl.u32 %v1939, 7
  %v1941 = vsub.s32 0, %v1940
  %v1942 = vrot.slane %v1919, %v1941
  %v1943 = vmul.f32 %v1522, %v1942
  %v1944 = vmul.f32 %v1525, %v1942
  %v1945 = vmul.f32 %v1530, %v1942
  %v1946 = vmul.f32 %v1533, %v1942
  %v1947 = vmul.f32 %v1538, %v1942
  %v1948 = vmul.f32 %v1541, %v1942
  %v1949 = vmul.f32 %v1546, %v1942
  %v1950 = vmul.f32 %v1549, %v1942
  %v1951 = vmul.f32 %v1554, %v1942
  %v1952 = vmul.f32 %v1557, %v1942
  %v1953 = vmul.f32 %v1562, %v1942
  %v1954 = vmul.f32 %v1565, %v1942
  %v1955 = vmul.f32 %v1570, %v1942
  %v1956 = vmul.f32 %v1573, %v1942
  %v1957 = vmul.f32 %v1578, %v1942
  %v1958 = vmul.f32 %v1581, %v1942
  %v1959 = vlaneseq
  %v1960 = vshrl.u32 %v1959, 7
  %v1961 = vsub.s32 0, %v1960
  %v1962 = vrot.slane %v1921, %v1961
  %v1963 = vadd.f32 %v1943, %v1962
  %v1964 = vadd.f32 %v1944, %v1962
  %v1965 = vadd.f32 %v1945, %v1962
  %v1966 = vadd.f32 %v1946, %v1962
  %v1967 = vadd.f32 %v1947, %v1962
  %v1968 = vadd.f32 %v1948, %v1962
  %v1969 = vadd.f32 %v1949, %v1962
  %v1970 = vadd.f32 %v1950, %v1962
  %v1971 = vadd.f32 %v1951, %v1962
  %v1972 = vadd.f32 %v1952, %v1962
  %v1973 = vadd.f32 %v1953, %v1962
  %v1974 = vadd.f32 %v1954, %v1962
  %v1975 = vadd.f32 %v1955, %v1962
  %v1976 = vadd.f32 %v1956, %v1962
  %v1977 = vadd.f32 %v1957, %v1962
  %v1978 = vadd.f32 %v1958, %v1962
  %v1979 = vmax.f32 %v1963, 0.0
  %v1980 = vmax.f32 %v1964, 0.0
  %v1981 = vmax.f32 %v1965, 0.0
  %v1982 = vmax.f32 %v1966, 0.0
  %v1983 = vmax.f32 %v1967, 0.0
  %v1984 = vmax.f32 %v1968, 0.0
  %v1985 = vmax.f32 %v1969, 0.0
  %v1986 = vmax.f32 %v1970, 0.0
  %v1987 = vmax.f32 %v1971, 0.0
  %v1988 = vmax.f32 %v1972, 0.0
  %v1989 = vmax.f32 %v1973, 0.0
  %v1990 = vmax.f32 %v1974, 0.0
  %v1991 = vmax.f32 %v1975, 0.0
  %v1992 = vmax.f32 %v1976, 0.0
  %v1993 = vmax.f32 %v1977, 0.0
  %v1994 = vmax.f32 %v1978, 0.0
  %v1995 = vpack.c.bf16 %v1980, %v1979
  %v1996 = vpack.c.bf16 %v1982, %v1981
  %v1997 = vpack.c.bf16 %v1984, %v1983
  %v1998 = vpack.c.bf16 %v1986, %v1985
  %v1999 = vpack.c.bf16 %v1988, %v1987
  %v2000 = vpack.c.bf16 %v1990, %v1989
  %v2001 = vpack.c.bf16 %v1992, %v1991
  %v2002 = vpack.c.bf16 %v1994, %v1993
  %v2004 = vlaneseq
  %v2005 = vshrl.u32 %v2004, 7
  %v2006 = vsub.s32 0, %v2005
  %v2007 = vrot.slane %v1938, %v2006
  %v2025 = vunpack.c.l.b16 %v1922
  %v2026 = vunpack.c.l.b16 %v1923
  %v2027 = vunpack.c.l.b16 %v1924
  %v2028 = vunpack.c.l.b16 %v1925
  %v2029 = vunpack.c.l.b16 %v1926
  %v2030 = vunpack.c.l.b16 %v1927
  %v2031 = vunpack.c.l.b16 %v1928
  %v2032 = vunpack.c.l.b16 %v1929
  %v2033 = vunpack.c.l.b16 %v1930
  %v2034 = vunpack.c.l.b16 %v1931
  %v2035 = vunpack.c.l.b16 %v1932
  %v2036 = vunpack.c.l.b16 %v1933
  %v2037 = vunpack.c.l.b16 %v1934
  %v2038 = vunpack.c.l.b16 %v1935
  %v2039 = vunpack.c.l.b16 %v1936
  %v2040 = vunpack.c.l.b16 %v1937
  %v2041 = vpack.c.b16 %v2026, %v2025
  %v2042 = vpack.c.b16 %v2028, %v2027
  %v2043 = vpack.c.b16 %v2030, %v2029
  %v2044 = vpack.c.b16 %v2032, %v2031
  %v2045 = vpack.c.b16 %v2034, %v2033
  %v2046 = vpack.c.b16 %v2036, %v2035
  %v2047 = vpack.c.b16 %v2038, %v2037
  %v2048 = vpack.c.b16 %v2040, %v2039
  %2057 = vmatprep.subr.bf16.mxu0 0
  %2058 = vmatpush1.bf16.msra.mxu0 %v2048
  %2059 = vmatprep.subr.bf16.mxu0 0
  %2060 = vmatpush1.bf16.msra.mxu0 %v2047
  %2061 = vmatprep.subr.bf16.mxu0 0
  %2062 = vmatpush1.bf16.msra.mxu0 %v2046
  %2063 = vmatprep.subr.bf16.mxu0 0
  %2064 = vmatpush1.bf16.msra.mxu0 %v2045
  %2065 = vmatprep.subr.bf16.mxu0 0
  %2066 = vmatpush1.bf16.msra.mxu0 %v2044
  %2067 = vmatprep.subr.bf16.mxu0 0
  %2068 = vmatpush1.bf16.msra.mxu0 %v2043
  %2069 = vmatprep.subr.bf16.mxu0 0
  %2070 = vmatpush1.bf16.msra.mxu0 %v2042
  %2071 = vmatprep.subr.bf16.mxu0 0
  %2072 = vmatpush1.bf16.msra.mxu0 %v2041
  %2073 = vmatprep.subr.bf16.mxu0 0
  %2074 = vmatpush2.bf16.msra.mxu0 0
  %2075 = vmatprep.subr.bf16.mxu0 0
  %2076 = vmatpush2.bf16.msra.mxu0 0
  %2077 = vmatprep.subr.bf16.mxu0 0
  %2078 = vmatpush2.bf16.msra.mxu0 0
  %2079 = vmatprep.subr.bf16.mxu0 0
  %2080 = vmatpush2.bf16.msra.mxu0 0
  %2081 = vmatprep.subr.bf16.mxu0 0
  %2082 = vmatpush2.bf16.msra.mxu0 0
  %2083 = vmatprep.subr.bf16.mxu0 0
  %2084 = vmatpush2.bf16.msra.mxu0 0
  %2085 = vmatprep.subr.bf16.mxu0 0
  %2086 = vmatpush2.bf16.msra.mxu0 0
  %2087 = vmatprep.subr.bf16.mxu0 0
  %2088 = vmatpush2.bf16.msra.mxu0 0
  %2089 = vmatprep.mubr.bf16.mxu0 0
  %2090 = vmatmul.mubr.bf16.gmra.mxu0 %v1995
  %v2091 = vpop.f32.mrf.mxu0
  %v2092 = vadd.f32 %v2007, %v2091
  %v2093 = vpop.f32.mrf.mxu0
  %v2094 = vpop.f32.mrf.mxu0
  %v2095 = vadd.f32 %v2007, %v2094
  %v2096 = vpop.f32.mrf.mxu0
  %2097 = vmatprep.mubr.bf16.mxu0 0
  %2098 = vmatmul.mubr.bf16.gmra.mxu0 %v1996
  %v2099 = vpop.f32.mrf.mxu0
  %v2100 = vadd.f32 %v2007, %v2099
  %v2101 = vpop.f32.mrf.mxu0
  %v2102 = vpop.f32.mrf.mxu0
  %v2103 = vadd.f32 %v2007, %v2102
  %v2104 = vpop.f32.mrf.mxu0
  %2105 = vmatprep.mubr.bf16.mxu0 0
  %2106 = vmatmul.mubr.bf16.gmra.mxu0 %v1997
  %v2107 = vpop.f32.mrf.mxu0
  %v2108 = vadd.f32 %v2007, %v2107
  %v2109 = vpop.f32.mrf.mxu0
  %v2110 = vpop.f32.mrf.mxu0
  %v2111 = vadd.f32 %v2007, %v2110
  %v2112 = vpop.f32.mrf.mxu0
  %2113 = vmatprep.mubr.bf16.mxu0 0
  %2114 = vmatmul.mubr.bf16.gmra.mxu0 %v1998
  %v2115 = vpop.f32.mrf.mxu0
  %v2116 = vadd.f32 %v2007, %v2115
  %v2117 = vpop.f32.mrf.mxu0
  %v2118 = vpop.f32.mrf.mxu0
  %v2119 = vadd.f32 %v2007, %v2118
  %v2120 = vpop.f32.mrf.mxu0
  %2121 = vmatprep.mubr.bf16.mxu0 0
  %2122 = vmatmul.mubr.bf16.gmra.mxu0 %v1999
  %v2123 = vpop.f32.mrf.mxu0
  %v2124 = vadd.f32 %v2007, %v2123
  %v2125 = vpop.f32.mrf.mxu0
  %v2126 = vpop.f32.mrf.mxu0
  %v2127 = vadd.f32 %v2007, %v2126
  %v2128 = vpop.f32.mrf.mxu0
  %2129 = vmatprep.mubr.bf16.mxu0 0
  %2130 = vmatmul.mubr.bf16.gmra.mxu0 %v2000
  %v2131 = vpop.f32.mrf.mxu0
  %v2132 = vadd.f32 %v2007, %v2131
  %v2133 = vpop.f32.mrf.mxu0
  %v2134 = vpop.f32.mrf.mxu0
  %v2135 = vadd.f32 %v2007, %v2134
  %v2136 = vpop.f32.mrf.mxu0
  %2137 = vmatprep.mubr.bf16.mxu0 0
  %2138 = vmatmul.mubr.bf16.gmra.mxu0 %v2001
  %v2139 = vpop.f32.mrf.mxu0
  %v2140 = vadd.f32 %v2007, %v2139
  %v2141 = vpop.f32.mrf.mxu0
  %v2142 = vpop.f32.mrf.mxu0
  %v2143 = vadd.f32 %v2007, %v2142
  %v2144 = vpop.f32.mrf.mxu0
  %2145 = vmatprep.mubr.bf16.mxu0 0
  %2146 = vmatmul.mubr.bf16.gmra.mxu0 %v2002
  %v2147 = vpop.f32.mrf.mxu0
  %v2148 = vadd.f32 %v2007, %v2147
  %v2149 = vpop.f32.mrf.mxu0
  %v2150 = vpop.f32.mrf.mxu0
  %v2151 = vadd.f32 %v2007, %v2150
  %v2152 = vpop.f32.mrf.mxu0
  %2153 = vdwg.mxu0
  %v2154 = vtanh.pop %v2092
  %v2155 = vtanh.pop %v2095
  %v2156 = vtanh.pop %v2100
  %v2157 = vtanh.pop %v2103
  %v2158 = vtanh.pop %v2108
  %v2159 = vtanh.pop %v2111
  %v2160 = vtanh.pop %v2116
  %v2161 = vtanh.pop %v2119
  %v2162 = vtanh.pop %v2124
  %v2163 = vtanh.pop %v2127
  %v2164 = vtanh.pop %v2132
  %v2165 = vtanh.pop %v2135
  %v2166 = vtanh.pop %v2140
  %v2167 = vtanh.pop %v2143
  %v2168 = vtanh.pop %v2148
  %v2169 = vtanh.pop %v2151
  %2170 = vst [vmem:[%s9] sm:$0xff] %v2154
  %2171 = vst [vmem:[%s9 + $0x8] sm:$0xff] %v2155
  %2172 = vst [vmem:[%s9 + $0x10] sm:$0xff] %v2156
  %2173 = vst [vmem:[%s9 + $0x18] sm:$0xff] %v2157
  %2174 = vst [vmem:[%s9 + $0x20] sm:$0xff] %v2158
  %2175 = vst [vmem:[%s9 + $0x28] sm:$0xff] %v2159
  %2176 = vst [vmem:[%s9 + $0x30] sm:$0xff] %v2160
  %2177 = vst [vmem:[%s9 + $0x38] sm:$0xff] %v2161
  %2178 = vst [vmem:[%s9 + $0x40] sm:$0xff] %v2162
  %2179 = vst [vmem:[%s9 + $0x48] sm:$0xff] %v2163
  %2180 = vst [vmem:[%s9 + $0x50] sm:$0xff] %v2164
  %2181 = vst [vmem:[%s9 + $0x58] sm:$0xff] %v2165
  %2182 = vst [vmem:[%s9 + $0x60] sm:$0xff] %v2166
  %2183 = vst [vmem:[%s9 + $0x68] sm:$0xff] %v2167
  %2184 = vst [vmem:[%s9 + $0x70] sm:$0xff] %v2168
  %2185 = vst [vmem:[%s9 + $0x78] sm:$0xff] %v2169
  %v2186 = vmul.f32 %v1731, %v1942
  %v2187 = vmul.f32 %v1734, %v1942
  %v2188 = vmul.f32 %v1739, %v1942
  %v2189 = vmul.f32 %v1742, %v1942
  %v2190 = vmul.f32 %v1747, %v1942
  %v2191 = vmul.f32 %v1750, %v1942
  %v2192 = vmul.f32 %v1755, %v1942
  %v2193 = vmul.f32 %v1758, %v1942
  %v2194 = vmul.f32 %v1763, %v1942
  %v2195 = vmul.f32 %v1766, %v1942
  %v2196 = vmul.f32 %v1771, %v1942
  %v2197 = vmul.f32 %v1774, %v1942
  %v2198 = vmul.f32 %v1779, %v1942
  %v2199 = vmul.f32 %v1782, %v1942
  %v2200 = vmul.f32 %v1787, %v1942
  %v2201 = vmul.f32 %v1790, %v1942
  %v2202 = vadd.f32 %v2186, %v1962
  %v2203 = vadd.f32 %v2187, %v1962
  %v2204 = vadd.f32 %v2188, %v1962
  %v2205 = vadd.f32 %v2189, %v1962
  %v2206 = vadd.f32 %v2190, %v1962
  %v2207 = vadd.f32 %v2191, %v1962
  %v2208 = vadd.f32 %v2192, %v1962
  %v2209 = vadd.f32 %v2193, %v1962
  %v2210 = vadd.f32 %v2194, %v1962
  %v2211 = vadd.f32 %v2195, %v1962
  %v2212 = vadd.f32 %v2196, %v1962
  %v2213 = vadd.f32 %v2197, %v1962
  %v2214 = vadd.f32 %v2198, %v1962
  %v2215 = vadd.f32 %v2199, %v1962
  %v2216 = vadd.f32 %v2200, %v1962
  %v2217 = vadd.f32 %v2201, %v1962
  %v2218 = vmax.f32 %v2202, 0.0
  %v2219 = vmax.f32 %v2203, 0.0
  %v2220 = vmax.f32 %v2204, 0.0
  %v2221 = vmax.f32 %v2205, 0.0
  %v2222 = vmax.f32 %v2206, 0.0
  %v2223 = vmax.f32 %v2207, 0.0
  %v2224 = vmax.f32 %v2208, 0.0
  %v2225 = vmax.f32 %v2209, 0.0
  %v2226 = vmax.f32 %v2210, 0.0
  %v2227 = vmax.f32 %v2211, 0.0
  %v2228 = vmax.f32 %v2212, 0.0
  %v2229 = vmax.f32 %v2213, 0.0
  %v2230 = vmax.f32 %v2214, 0.0
  %v2231 = vmax.f32 %v2215, 0.0
  %v2232 = vmax.f32 %v2216, 0.0
  %v2233 = vmax.f32 %v2217, 0.0
  %v2234 = vpack.c.bf16 %v2219, %v2218
  %v2235 = vpack.c.bf16 %v2221, %v2220
  %v2236 = vpack.c.bf16 %v2223, %v2222
  %v2237 = vpack.c.bf16 %v2225, %v2224
  %v2238 = vpack.c.bf16 %v2227, %v2226
  %v2239 = vpack.c.bf16 %v2229, %v2228
  %v2240 = vpack.c.bf16 %v2231, %v2230
  %v2241 = vpack.c.bf16 %v2233, %v2232
  %2242 = vmatprep.subr.bf16.mxu0 0
  %2243 = vmatpush1.bf16.msra.mxu0 %v2048
  %2244 = vmatprep.subr.bf16.mxu0 0
  %2245 = vmatpush1.bf16.msra.mxu0 %v2047
  %2246 = vmatprep.subr.bf16.mxu0 0
  %2247 = vmatpush1.bf16.msra.mxu0 %v2046
  %2248 = vmatprep.subr.bf16.mxu0 0
  %2249 = vmatpush1.bf16.msra.mxu0 %v2045
  %2250 = vmatprep.subr.bf16.mxu0 0
  %2251 = vmatpush1.bf16.msra.mxu0 %v2044
  %2252 = vmatprep.subr.bf16.mxu0 0
  %2253 = vmatpush1.bf16.msra.mxu0 %v2043
  %2254 = vmatprep.subr.bf16.mxu0 0
  %2255 = vmatpush1.bf16.msra.mxu0 %v2042
  %2256 = vmatprep.subr.bf16.mxu0 0
  %2257 = vmatpush1.bf16.msra.mxu0 %v2041
  %2258 = vmatprep.subr.bf16.mxu0 0
  %2259 = vmatpush2.bf16.msra.mxu0 0
  %2260 = vmatprep.subr.bf16.mxu0 0
  %2261 = vmatpush2.bf16.msra.mxu0 0
  %2262 = vmatprep.subr.bf16.mxu0 0
  %2263 = vmatpush2.bf16.msra.mxu0 0
  %2264 = vmatprep.subr.bf16.mxu0 0
  %2265 = vmatpush2.bf16.msra.mxu0 0
  %2266 = vmatprep.subr.bf16.mxu0 0
  %2267 = vmatpush2.bf16.msra.mxu0 0
  %2268 = vmatprep.subr.bf16.mxu0 0
  %2269 = vmatpush2.bf16.msra.mxu0 0
  %2270 = vmatprep.subr.bf16.mxu0 0
  %2271 = vmatpush2.bf16.msra.mxu0 0
  %2272 = vmatprep.subr.bf16.mxu0 0
  %2273 = vmatpush2.bf16.msra.mxu0 0
  %2274 = vmatprep.mubr.bf16.mxu0 0
  %2275 = vmatmul.mubr.bf16.gmra.mxu0 %v2234
  %v2276 = vpop.f32.mrf.mxu0
  %v2277 = vadd.f32 %v2007, %v2276
  %v2278 = vpop.f32.mrf.mxu0
  %v2279 = vpop.f32.mrf.mxu0
  %v2280 = vadd.f32 %v2007, %v2279
  %v2281 = vpop.f32.mrf.mxu0
  %2282 = vmatprep.mubr.bf16.mxu0 0
  %2283 = vmatmul.mubr.bf16.gmra.mxu0 %v2235
  %v2284 = vpop.f32.mrf.mxu0
  %v2285 = vadd.f32 %v2007, %v2284
  %v2286 = vpop.f32.mrf.mxu0
  %v2287 = vpop.f32.mrf.mxu0
  %v2288 = vadd.f32 %v2007, %v2287
  %v2289 = vpop.f32.mrf.mxu0
  %2290 = vmatprep.mubr.bf16.mxu0 0
  %2291 = vmatmul.mubr.bf16.gmra.mxu0 %v2236
  %v2292 = vpop.f32.mrf.mxu0
  %v2293 = vadd.f32 %v2007, %v2292
  %v2294 = vpop.f32.mrf.mxu0
  %v2295 = vpop.f32.mrf.mxu0
  %v2296 = vadd.f32 %v2007, %v2295
  %v2297 = vpop.f32.mrf.mxu0
  %2298 = vmatprep.mubr.bf16.mxu0 0
  %2299 = vmatmul.mubr.bf16.gmra.mxu0 %v2237
  %v2300 = vpop.f32.mrf.mxu0
  %v2301 = vadd.f32 %v2007, %v2300
  %v2302 = vpop.f32.mrf.mxu0
  %v2303 = vpop.f32.mrf.mxu0
  %v2304 = vadd.f32 %v2007, %v2303
  %v2305 = vpop.f32.mrf.mxu0
  %2306 = vmatprep.mubr.bf16.mxu0 0
  %2307 = vmatmul.mubr.bf16.gmra.mxu0 %v2238
  %v2308 = vpop.f32.mrf.mxu0
  %v2309 = vadd.f32 %v2007, %v2308
  %v2310 = vpop.f32.mrf.mxu0
  %v2311 = vpop.f32.mrf.mxu0
  %v2312 = vadd.f32 %v2007, %v2311
  %v2313 = vpop.f32.mrf.mxu0
  %2314 = vmatprep.mubr.bf16.mxu0 0
  %2315 = vmatmul.mubr.bf16.gmra.mxu0 %v2239
  %v2316 = vpop.f32.mrf.mxu0
  %v2317 = vadd.f32 %v2007, %v2316
  %v2318 = vpop.f32.mrf.mxu0
  %v2319 = vpop.f32.mrf.mxu0
  %v2320 = vadd.f32 %v2007, %v2319
  %v2321 = vpop.f32.mrf.mxu0
  %2322 = vmatprep.mubr.bf16.mxu0 0
  %2323 = vmatmul.mubr.bf16.gmra.mxu0 %v2240
  %v2324 = vpop.f32.mrf.mxu0
  %v2325 = vadd.f32 %v2007, %v2324
  %v2326 = vpop.f32.mrf.mxu0
  %v2327 = vpop.f32.mrf.mxu0
  %v2328 = vadd.f32 %v2007, %v2327
  %v2329 = vpop.f32.mrf.mxu0
  %2330 = vmatprep.mubr.bf16.mxu0 0
  %2331 = vmatmul.mubr.bf16.gmra.mxu0 %v2241
  %v2332 = vpop.f32.mrf.mxu0
  %v2333 = vadd.f32 %v2007, %v2332
  %v2334 = vpop.f32.mrf.mxu0
  %v2335 = vpop.f32.mrf.mxu0
  %v2336 = vadd.f32 %v2007, %v2335
  %v2337 = vpop.f32.mrf.mxu0
  %2338 = vdwg.mxu0
  %v2339 = vtanh.pop %v2277
  %v2340 = vtanh.pop %v2280
  %v2341 = vtanh.pop %v2285
  %v2342 = vtanh.pop %v2288
  %v2343 = vtanh.pop %v2293
  %v2344 = vtanh.pop %v2296
  %v2345 = vtanh.pop %v2301
  %v2346 = vtanh.pop %v2304
  %v2347 = vtanh.pop %v2309
  %v2348 = vtanh.pop %v2312
  %v2349 = vtanh.pop %v2317
  %v2350 = vtanh.pop %v2320
  %v2351 = vtanh.pop %v2325
  %v2352 = vtanh.pop %v2328
  %v2353 = vtanh.pop %v2333
  %v2354 = vtanh.pop %v2336
  %2355 = vst [vmem:[%s9 + $0x80] sm:$0xff] %v2339
  %2356 = vst [vmem:[%s9 + $0x88] sm:$0xff] %v2340
  %2357 = vst [vmem:[%s9 + $0x90] sm:$0xff] %v2341
  %2358 = vst [vmem:[%s9 + $0x98] sm:$0xff] %v2342
  %2359 = vst [vmem:[%s9 + $0xa0] sm:$0xff] %v2343
  %2360 = vst [vmem:[%s9 + $0xa8] sm:$0xff] %v2344
  %2361 = vst [vmem:[%s9 + $0xb0] sm:$0xff] %v2345
  %2362 = vst [vmem:[%s9 + $0xb8] sm:$0xff] %v2346
  %2363 = vst [vmem:[%s9 + $0xc0] sm:$0xff] %v2347
  %2364 = vst [vmem:[%s9 + $0xc8] sm:$0xff] %v2348
  %2365 = vst [vmem:[%s9 + $0xd0] sm:$0xff] %v2349
  %2366 = vst [vmem:[%s9 + $0xd8] sm:$0xff] %v2350
  %2367 = vst [vmem:[%s9 + $0xe0] sm:$0xff] %v2351
  %2368 = vst [vmem:[%s9 + $0xe8] sm:$0xff] %v2352
  %2369 = vst [vmem:[%s9 + $0xf0] sm:$0xff] %v2353
  %2370 = vst [vmem:[%s9 + $0xf8] sm:$0xff] %v2354
  // Predicated region
  $region38: #{tabular_generator.1} parent=0 // pred_check
    _
  $region39: #{tabular_generator.1} parent=0 // pred_check_branch
    %2372 = sbr.rel (0) target = $region41
  $region40: #{tabular_generator.1} parent=0 // pred_region
    _
  $region41: #{tabular_generator.1} parent=0 // pred_fallthru
    _
  // Predicated region
  $region42: #{tabular_generator.1} parent=0 // pred_check
    _
  $region43: #{tabular_generator.1} parent=0 // pred_check_branch
    %2374 = sbr.rel (0) target = $region45
  $region44: #{tabular_generator.1} parent=0 // pred_region
    _
  $region45: #{tabular_generator.1} parent=0 // pred_fallthru
    _

</llo_original>
